<compile_context>
chip_gen: v7x
topology: tpu7x:2x2x1
jax: 0.10.0
libtpu: 0.0.40
codegen_flags: <defaults>
</compile_context>

<pallas_src>
from functools import partial

import jax
import jax.numpy as jnp
from jax.experimental import pallas as pl
from jax.experimental.pallas import tpu as pltpu


# ----------------------------------------------------------------------------
# Fused forward kernel: G graphs per grid step, everything in VMEM.
# ----------------------------------------------------------------------------
def fused_forward_kernel(x_ref, adj_ref, mask_ref,
                         wc1_0_ref, wc2_0_ref, wjk_0_ref, b0_ref,
                         wc1_1_ref, wc2_1_ref, wjk_1_ref, b1_ref,
                         w1h_ref, b1h_ref, w2h_ref, b2h_ref,
                         out_ref):
    x = x_ref[...]                                  # (G, N, Fin) compute dtype
    cdt = x.dtype
    G, N, Fin = x.shape
    H = wjk_0_ref.shape[1]

    # Mean-aggregation normalization shared by all four SAGE layers:
    # row-normalize adj once with 1/clamp(deg, 1) (degree math kept in f32 so
    # 0/1 sums are exact) and reuse it, instead of dividing every aggregation.
    adj32 = adj_ref[...].astype(jnp.float32)        # (G, N, N)
    deg = jnp.maximum(jnp.sum(adj32, axis=-1, keepdims=True), 1.0)
    adj_n = (adj32 * (1.0 / deg)).astype(cdt)

    # Node-validity mask broadcast ONCE to (G*N, H) and reused 6x (all block
    # outputs are H-wide); avoids re-emitting the broadcast per multiply.
    mH = jnp.broadcast_to(mask_ref[...].reshape(G * N, 1), (G * N, H))

    def agg(xg):
        # Batched mean aggregation, then flatten to (G*N, F) in compute dtype.
        h = jnp.einsum("gij,gjf->gif", adj_n, xg,
                       preferred_element_type=jnp.float32)
        return h.astype(cdt).reshape(G * N, xg.shape[-1])

    def conv_block(xg, wc1, wc2, wjk, b):
        # xg: (G, N, F) compute dtype.  All node-wise GEMMs run flattened as
        # (G*N, .) @ (., H); the rel/root pair (resp. the JK pair) is fused
        # into one dot against the pre-concatenated weights [Wrel; Wroot]
        # (resp. [Wlin1; Wlin2]), so the concat output is never materialized
        # in HBM and each layer costs a single MXU push/pop sequence.
        F = xg.shape[-1]
        xf = xg.reshape(G * N, F)

        # DenseSAGEConv 1
        z1 = jnp.dot(jnp.concatenate([agg(xg), xf], axis=-1), wc1,
                     preferred_element_type=jnp.float32) + b[0:1, :]
        x1 = jnp.maximum(z1 * mH, 0.0)              # (G*N, H) f32
        x1c = x1.astype(cdt)

        # DenseSAGEConv 2
        z2 = jnp.dot(jnp.concatenate([agg(x1c.reshape(G, N, H)), x1c], axis=-1),
                     wc2, preferred_element_type=jnp.float32) + b[1:2, :]
        x2 = jnp.maximum(z2 * mH, 0.0)

        # JumpingKnowledge('cat') + Linear(2H -> H) + ReLU + mask
        y = jnp.dot(jnp.concatenate([x1c, x2.astype(cdt)], axis=-1), wjk,
                    preferred_element_type=jnp.float32) + b[2:3, :]
        return jnp.maximum(y, 0.0) * mH             # (G*N, H) f32

    y0 = conv_block(x, wc1_0_ref[...], wc2_0_ref[...],
                    wjk_0_ref[...], b0_ref[...])
    y1 = conv_block(y0.astype(cdt).reshape(G, N, H),
                    wc1_1_ref[...], wc2_1_ref[...],
                    wjk_1_ref[...], b1_ref[...])

    # global_add_pool per block + concat -> (G, 2H); stays on-chip.
    p = jnp.concatenate([jnp.sum(y0.reshape(G, N, H), axis=1),
                         jnp.sum(y1.reshape(G, N, H), axis=1)], axis=-1)

    # MLP head in f32 (tiny).  BatchNorm1d (eval, running stats) is folded
    # into w1h/b1h by the wrapper.
    # TODO(synk): dropout implemented for eval mode only (identity).
    hid = jnp.maximum(
        jnp.dot(p, w1h_ref[...], preferred_element_type=jnp.float32)
        + b1h_ref[...], 0.0)
    logits = (jnp.dot(hid, w2h_ref[...], preferred_element_type=jnp.float32)
              + b2h_ref[...])
    mx = jnp.max(logits, axis=-1, keepdims=True)
    e = jnp.exp(logits - mx)
    probs = e / jnp.sum(e, axis=-1, keepdims=True)
    out_ref[...] = probs.reshape(G, 1, -1).astype(out_ref.dtype)


def _const_spec(shape):
    n = len(shape)
    return pl.BlockSpec(shape, lambda c, n=n: (0,) * n)


def _cost_estimate(B, N, Fin, H, C, operands):
    flops_per_graph = (
        2 * N * N * Fin + 4 * N * Fin * H + 2 * N * N * H + 8 * N * H * H  # blk0
        + 4 * N * N * H + 12 * N * H * H                                    # blk1
        + 4 * H * H + 2 * H * C)                                            # head
    bytes_accessed = sum(int(a.size) * a.dtype.itemsize for a in operands)
    bytes_accessed += B * C * 4
    return pl.CostEstimate(flops=B * flops_per_graph,
                           transcendentals=B * C,
                           bytes_accessed=bytes_accessed)


@partial(jax.jit, static_argnames=("num_chunks", "compute_dtype"))
def baseline_model_forward(x, adj, mask_f, packed, *, num_chunks=1,
                           compute_dtype=jnp.bfloat16):
    """Full BaselineModel forward (dense path, num_blocks=2, pool='add').

    num_chunks: grid size; each step processes B//num_chunks graphs.  Use 1
    (fully collapsed) for small batches; 2 on v7x with larger batches so both
    TensorCores get a chunk.  compute_dtype: dtype of MXU operands
    (bf16 recommended on v5e/v6e/v7x; accumulation stays f32).
    """
    B, N, Fin = x.shape
    H = packed["wjk_0"].shape[1]
    C = packed["w2h"].shape[1]
    assert B % num_chunks == 0, "num_chunks must divide the batch"
    G = B // num_chunks
    cdt = jnp.dtype(compute_dtype)

    # Matmul operands in the compute dtype (halves adj/weight DMA bytes when
    # bf16); mask, biases and the head stay f32.
    xc = x.astype(cdt)
    adjc = adj.astype(cdt)
    wc1_0 = packed["wc1_0"].astype(cdt); wc2_0 = packed["wc2_0"].astype(cdt)
    wjk_0 = packed["wjk_0"].astype(cdt)
    wc1_1 = packed["wc1_1"].astype(cdt); wc2_1 = packed["wc2_1"].astype(cdt)
    wjk_1 = packed["wjk_1"].astype(cdt)

    operands = (xc, adjc, mask_f,
                wc1_0, wc2_0, wjk_0, packed["b_0"],
                wc1_1, wc2_1, wjk_1, packed["b_1"],
                packed["w1h"], packed["b1h"], packed["w2h"], packed["b2h"])

    out3 = pl.pallas_call(
        fused_forward_kernel,
        out_shape=jax.ShapeDtypeStruct((B, 1, C), jnp.float32),
        grid=(num_chunks,),
        in_specs=[
            pl.BlockSpec((G, N, Fin), lambda c: (c, 0, 0)),
            pl.BlockSpec((G, N, N), lambda c: (c, 0, 0)),
            pl.BlockSpec((G, N, 1), lambda c: (c, 0, 0)),
        ] + [_const_spec(w.shape) for w in operands[3:]],
        out_specs=pl.BlockSpec((G, 1, C), lambda c: (c, 0, 0)),
        compiler_params=pltpu.CompilerParams(
            dimension_semantics=("parallel",)),
        cost_estimate=_cost_estimate(B, N, Fin, H, C, operands),
    )(*operands)
    return out3[:, 0, :]


# ----------------------------------------------------------------------------
# One-time parameter preparation: concat rel/root/JK weights, pack biases,
# fold eval-mode BatchNorm into linear1.
# ----------------------------------------------------------------------------
def prepare_params(params, eps=1e-5):
    def pack_block(bp):
        return (jnp.concatenate([bp["wrel1"], bp["wroot1"]], axis=0),
                jnp.concatenate([bp["wrel2"], bp["wroot2"]], axis=0),
                jnp.concatenate([bp["wlin1"], bp["wlin2"]], axis=0),
                jnp.concatenate([bp["brel1"], bp["brel2"], bp["blin"]], axis=0))

    wc1_0, wc2_0, wjk_0, b_0 = pack_block(params["block0"])
    wc1_1, wc2_1, wjk_1, b_1 = pack_block(params["block1"])

    hp = params["head"]
    scale = hp["gamma"] * jax.lax.rsqrt(hp["rvar"] + eps)            # (1, 2H)
    w1h = scale.T * hp["w1"]                                         # (2H, H)
    b1h = hp["b1"] + (hp["beta"] - hp["rmean"] * scale) @ hp["w1"]   # (1, H)

    return {
        "wc1_0": wc1_0, "wc2_0": wc2_0, "wjk_0": wjk_0, "b_0": b_0,
        "wc1_1": wc1_1, "wc2_1": wc2_1, "wjk_1": wjk_1, "b_1": b_1,
        "w1h": w1h, "b1h": b1h, "w2h": hp["w2"], "b2h": hp["b2"],
    }


# ----------------------------------------------------------------------------
# Pure-JAX reference (mirrors the torch module, eval mode) for validation.
# ----------------------------------------------------------------------------
def reference_forward(x, adj, mask_f, params, eps=1e-5):
    def dense_sage(xin, wrel, brel, wroot):
        deg = jnp.maximum(jnp.sum(adj, axis=-1, keepdims=True), 1.0)
        h = jnp.einsum("bij,bjf->bif", adj, xin) / deg
        return (h @ wrel + brel + xin @ wroot) * mask_f

    def block(xin, bp):
        x1 = jax.nn.relu(dense_sage(xin, bp["wrel1"], bp["brel1"], bp["wroot1"]))
        x2 = jax.nn.relu(dense_sage(x1, bp["wrel2"], bp["brel2"], bp["wroot2"]))
        cat = jnp.concatenate([x1, x2], axis=-1)
        wcat = jnp.concatenate([bp["wlin1"], bp["wlin2"]], axis=0)
        return jax.nn.relu(cat @ wcat + bp["blin"]) * mask_f

    y0 = block(x, params["block0"])
    y1 = block(y0, params["block1"])
    p = jnp.concatenate([jnp.sum(y0, axis=1), jnp.sum(y1, axis=1)], axis=-1)

    hp = params["head"]
    xn = (p - hp["rmean"]) * jax.lax.rsqrt(hp["rvar"] + eps) * hp["gamma"] + hp["beta"]
    h = jax.nn.relu(xn @ hp["w1"] + hp["b1"])
    logits = h @ hp["w2"] + hp["b2"]
    return jax.nn.softmax(logits, axis=1)


# ----------------------------------------------------------------------------
# Deterministic parameter init (synthetic, not a checkpoint)
# ----------------------------------------------------------------------------
def init_conv_block(key, fin, h):
    ks = jax.random.split(key, 8)
    s = 0.1
    return {
        # weights stored as [in, out] (pre-transposed vs. torch Linear)
        "wrel1": jax.random.normal(ks[0], (fin, h), jnp.float32) * s,
        "brel1": jax.random.normal(ks[1], (1, h), jnp.float32) * s,
        "wroot1": jax.random.normal(ks[2], (fin, h), jnp.float32) * s,
        "wrel2": jax.random.normal(ks[3], (h, h), jnp.float32) * s,
        "brel2": jax.random.normal(ks[4], (1, h), jnp.float32) * s,
        "wroot2": jax.random.normal(ks[5], (h, h), jnp.float32) * s,
        # Linear(2H, H) split: rows 0:H act on conv1 output, H:2H on conv2
        "wlin1": jax.random.normal(ks[6], (h, h), jnp.float32) * s,
        "wlin2": jax.random.normal(ks[7], (h, h), jnp.float32) * s,
        "blin": jnp.zeros((1, h), jnp.float32),
    }


def init_head(key, out_dim, h, c):
    ks = jax.random.split(key, 6)
    s = 0.1
    return {
        "gamma": 1.0 + 0.1 * jax.random.normal(ks[0], (1, out_dim), jnp.float32),
        "beta": 0.1 * jax.random.normal(ks[1], (1, out_dim), jnp.float32),
        "rmean": 0.1 * jax.random.normal(ks[2], (1, out_dim), jnp.float32),
        "rvar": 0.5 + jax.random.uniform(ks[3], (1, out_dim), jnp.float32),
        "w1": jax.random.normal(ks[4], (out_dim, h), jnp.float32) * s,
        "b1": jnp.zeros((1, h), jnp.float32),
        "w2": jax.random.normal(ks[5], (h, c), jnp.float32) * s,
        "b2": jnp.zeros((1, c), jnp.float32),
    }


if __name__ == "__main__":
    key = jax.random.PRNGKey(0)
    B, N, Fin, H, C = 2, 16, 8, 32, 4   # graphs, max nodes, features, hidden, classes

    k_x, k_adj, k_b0, k_b1, k_head = jax.random.split(key, 5)

    # node-validity mask: graph 0 has 16 nodes, graph 1 has 12
    num_nodes = jnp.array([16, 12])
    mask_bool = (jnp.arange(N)[None, :] < num_nodes[:, None])          # [B, N]
    mask_f = mask_bool.astype(jnp.float32)[:, :, None]                 # [B, N, 1]

    x = jax.random.normal(k_x, (B, N, Fin), jnp.float32) * mask_f      # [B, N, Fin]
    adj = (jax.random.uniform(k_adj, (B, N, N)) > 0.5).astype(jnp.float32)
    adj = jnp.maximum(adj, jnp.transpose(adj, (0, 2, 1)))              # symmetric
    adj = adj * mask_f * jnp.transpose(mask_f, (0, 2, 1))              # zero invalid rows/cols

    params = {
        "block0": init_conv_block(k_b0, Fin, H),
        "block1": init_conv_block(k_b1, H, H),
        "head": init_head(k_head, 2 * H, H, C),
    }
    packed = prepare_params(params)

    # Production config: fully collapsed grid, bf16 matmul operands.
    out_bf16 = baseline_model_forward(x, adj, mask_f, packed,
                                      num_chunks=1, compute_dtype=jnp.bfloat16)
    out_bf16 = jax.block_until_ready(out_bf16)
    # f32 variant for tight numerical validation of the fused kernel.
    out_f32 = baseline_model_forward(x, adj, mask_f, packed,
                                     num_chunks=1, compute_dtype=jnp.float32)
    out_f32 = jax.block_until_ready(out_f32)

    assert out_bf16.shape == (B, C) and out_f32.shape == (B, C)
    # softmax rows sum to 1
    assert bool(jnp.all(jnp.abs(jnp.sum(out_bf16, axis=1) - 1.0) < 1e-3))
    assert bool(jnp.all(jnp.abs(jnp.sum(out_f32, axis=1) - 1.0) < 1e-4))
    # match the pure-JAX reference of the torch forward
    with jax.default_matmul_precision("float32"):
        ref = reference_forward(x, adj, mask_f, params)
    assert bool(jnp.allclose(out_f32, ref, atol=2e-3, rtol=2e-3)), (out_f32, ref)
    assert bool(jnp.allclose(out_bf16, ref, atol=3e-2, rtol=3e-2)), (out_bf16, ref)
    print("KERNEL_OK")
</pallas_src>

<mosaic_0001>
module attributes {stable_mosaic.version = 11 : i64} {
  func.func @fused_forward_kernel(%arg0: i32, %arg1: memref<2x16x8xbf16, #tpu.memory_space<vmem>>, %arg2: memref<2x16x16xbf16, #tpu.memory_space<vmem>>, %arg3: memref<2x16x1xf32, #tpu.memory_space<vmem>>, %arg4: memref<16x32xbf16, #tpu.memory_space<vmem>>, %arg5: memref<64x32xbf16, #tpu.memory_space<vmem>>, %arg6: memref<64x32xbf16, #tpu.memory_space<vmem>>, %arg7: memref<3x32xf32, #tpu.memory_space<vmem>>, %arg8: memref<64x32xbf16, #tpu.memory_space<vmem>>, %arg9: memref<64x32xbf16, #tpu.memory_space<vmem>>, %arg10: memref<64x32xbf16, #tpu.memory_space<vmem>>, %arg11: memref<3x32xf32, #tpu.memory_space<vmem>>, %arg12: memref<64x32xf32, #tpu.memory_space<vmem>>, %arg13: memref<1x32xf32, #tpu.memory_space<vmem>>, %arg14: memref<32x4xf32, #tpu.memory_space<vmem>>, %arg15: memref<1x4xf32, #tpu.memory_space<vmem>>, %arg16: memref<2x1x4xf32, #tpu.memory_space<vmem>>) attributes {dimension_semantics = [#tpu.dimension_semantics<parallel>], iteration_bounds = array<i64: 1>, scalar_prefetch = 0 : i64, scratch_operands = 0 : i64, tpu.core_type = #tpu.core_type<tc>, window_params = [{transform_indices = @transform_0, window_bounds = array<i64: 2, 16, 8>}, {transform_indices = @transform_1, window_bounds = array<i64: 2, 16, 16>}, {transform_indices = @transform_2, window_bounds = array<i64: 2, 16, 1>}, {pipeline_mode = #tpu.pipeline_mode<synchronous>, transform_indices = @transform_3, window_bounds = array<i64: 16, 32>}, {pipeline_mode = #tpu.pipeline_mode<synchronous>, transform_indices = @transform_4, window_bounds = array<i64: 64, 32>}, {pipeline_mode = #tpu.pipeline_mode<synchronous>, transform_indices = @transform_5, window_bounds = array<i64: 64, 32>}, {pipeline_mode = #tpu.pipeline_mode<synchronous>, transform_indices = @transform_6, window_bounds = array<i64: 3, 32>}, {pipeline_mode = #tpu.pipeline_mode<synchronous>, transform_indices = @transform_7, window_bounds = array<i64: 64, 32>}, {pipeline_mode = #tpu.pipeline_mode<synchronous>, transform_indices = @transform_8, window_bounds = array<i64: 64, 32>}, {pipeline_mode = #tpu.pipeline_mode<synchronous>, transform_indices = @transform_9, window_bounds = array<i64: 64, 32>}, {pipeline_mode = #tpu.pipeline_mode<synchronous>, transform_indices = @transform_10, window_bounds = array<i64: 3, 32>}, {pipeline_mode = #tpu.pipeline_mode<synchronous>, transform_indices = @transform_11, window_bounds = array<i64: 64, 32>}, {pipeline_mode = #tpu.pipeline_mode<synchronous>, transform_indices = @transform_12, window_bounds = array<i64: 1, 32>}, {pipeline_mode = #tpu.pipeline_mode<synchronous>, transform_indices = @transform_13, window_bounds = array<i64: 32, 4>}, {pipeline_mode = #tpu.pipeline_mode<synchronous>, transform_indices = @transform_14, window_bounds = array<i64: 1, 4>}, {transform_indices = @transform_15, window_bounds = array<i64: 2, 1, 4>}]} {
    %c0 = arith.constant 0 : index
    %c0_0 = arith.constant 0 : index
    %c0_1 = arith.constant 0 : index
    %0 = vector.load %arg1[%c0, %c0_0, %c0_1] : memref<2x16x8xbf16, #tpu.memory_space<vmem>>, vector<2x16x8xbf16>
    %c0_2 = arith.constant 0 : index
    %c0_3 = arith.constant 0 : index
    %c0_4 = arith.constant 0 : index
    %1 = vector.load %arg2[%c0_2, %c0_3, %c0_4] : memref<2x16x16xbf16, #tpu.memory_space<vmem>>, vector<2x16x16xbf16>
    %2 = arith.extf %1 : vector<2x16x16xbf16> to vector<2x16x16xf32>
    %cst = arith.constant dense<0.000000e+00> : vector<2x16xf32>
    %3 = vector.multi_reduction <add>, %2, %cst [2] : vector<2x16x16xf32> to vector<2x16xf32>
    %4 = vector.shape_cast %3 : vector<2x16xf32> to vector<2x16x1xf32>
    %cst_5 = arith.constant 1.000000e+00 : f32
    %5 = vector.broadcast %cst_5 : f32 to vector<2x16x1xf32>
    %6 = arith.maximumf %4, %5 : vector<2x16x1xf32>
    %cst_6 = arith.constant 1.000000e+00 : f32
    %7 = vector.broadcast %cst_6 : f32 to vector<2x16x1xf32>
    %8 = arith.divf %7, %6 : vector<2x16x1xf32>
    %9 = vector.broadcast %8 : vector<2x16x1xf32> to vector<2x16x16xf32>
    %10 = arith.mulf %2, %9 : vector<2x16x16xf32>
    %11 = arith.truncf %10 : vector<2x16x16xf32> to vector<2x16x16xbf16>
    %c0_7 = arith.constant 0 : index
    %c0_8 = arith.constant 0 : index
    %c0_9 = arith.constant 0 : index
    %12 = vector.load %arg3[%c0_7, %c0_8, %c0_9] : memref<2x16x1xf32, #tpu.memory_space<vmem>>, vector<2x16x1xf32>
    %13 = vector.shape_cast %12 : vector<2x16x1xf32> to vector<32x1xf32>
    %14 = vector.shape_cast %13 : vector<32x1xf32> to vector<32x1xf32>
    %15 = vector.broadcast %14 : vector<32x1xf32> to vector<32x32xf32>
    %c0_10 = arith.constant 0 : index
    %c0_11 = arith.constant 0 : index
    %16 = vector.load %arg4[%c0_10, %c0_11] : memref<16x32xbf16, #tpu.memory_space<vmem>>, vector<16x32xbf16>
    %c0_12 = arith.constant 0 : index
    %c0_13 = arith.constant 0 : index
    %17 = vector.load %arg5[%c0_12, %c0_13] : memref<64x32xbf16, #tpu.memory_space<vmem>>, vector<64x32xbf16>
    %c0_14 = arith.constant 0 : index
    %c0_15 = arith.constant 0 : index
    %18 = vector.load %arg6[%c0_14, %c0_15] : memref<64x32xbf16, #tpu.memory_space<vmem>>, vector<64x32xbf16>
    %c0_16 = arith.constant 0 : index
    %c0_17 = arith.constant 0 : index
    %19 = vector.load %arg7[%c0_16, %c0_17] : memref<3x32xf32, #tpu.memory_space<vmem>>, vector<3x32xf32>
    %20 = vector.shape_cast %0 : vector<2x16x8xbf16> to vector<32x8xbf16>
    "tpu.trace_start"() <{level = 10 : i32, message = "gij,gjf->gif"}> : () -> ()
    %cst_18 = arith.constant dense<0.000000e+00> : vector<2x16x8xf32>
    %21 = tpu.matmul %11, %0, %cst_18 {dimension_numbers = #tpu.dot_dimension_numbers<[2], [1], [1], [2], [0, 0, 0, 1, 1, 2], [0], [0]>} : vector<2x16x16xbf16>, vector<2x16x8xbf16>, vector<2x16x8xf32> -> vector<2x16x8xf32>
    "tpu.trace_stop"() : () -> ()
    %22 = arith.truncf %21 : vector<2x16x8xf32> to vector<2x16x8xbf16>
    %23 = vector.shape_cast %22 : vector<2x16x8xbf16> to vector<32x8xbf16>
    %24 = tpu.concatenate %23, %20 in 1 : vector<32x8xbf16>, vector<32x8xbf16> -> vector<32x16xbf16>
    %cst_19 = arith.constant dense<0.000000e+00> : vector<32x32xf32>
    %25 = tpu.matmul %24, %16, %cst_19 {dimension_numbers = #tpu.dot_dimension_numbers<[1], [0], [0], [1], [0, 0, 1, 1], [], []>} : vector<32x16xbf16>, vector<16x32xbf16>, vector<32x32xf32> -> vector<32x32xf32>
    %26 = vector.extract_strided_slice %19 {offsets = [0, 0], sizes = [1, 32], strides = [1, 1]} : vector<3x32xf32> to vector<1x32xf32>
    %27 = vector.broadcast %26 : vector<1x32xf32> to vector<32x32xf32>
    %28 = arith.addf %25, %27 : vector<32x32xf32>
    %29 = arith.mulf %28, %15 : vector<32x32xf32>
    %cst_20 = arith.constant 0.000000e+00 : f32
    %30 = vector.broadcast %cst_20 : f32 to vector<32x32xf32>
    %31 = arith.maximumf %29, %30 : vector<32x32xf32>
    %32 = arith.truncf %31 : vector<32x32xf32> to vector<32x32xbf16>
    %33 = vector.shape_cast %32 : vector<32x32xbf16> to vector<2x16x32xbf16>
    "tpu.trace_start"() <{level = 10 : i32, message = "gij,gjf->gif"}> : () -> ()
    %cst_21 = arith.constant dense<0.000000e+00> : vector<2x16x32xf32>
    %34 = tpu.matmul %11, %33, %cst_21 {dimension_numbers = #tpu.dot_dimension_numbers<[2], [1], [1], [2], [0, 0, 0, 1, 1, 2], [0], [0]>} : vector<2x16x16xbf16>, vector<2x16x32xbf16>, vector<2x16x32xf32> -> vector<2x16x32xf32>
    "tpu.trace_stop"() : () -> ()
    %35 = arith.truncf %34 : vector<2x16x32xf32> to vector<2x16x32xbf16>
    %36 = vector.shape_cast %35 : vector<2x16x32xbf16> to vector<32x32xbf16>
    %37 = tpu.concatenate %36, %32 in 1 : vector<32x32xbf16>, vector<32x32xbf16> -> vector<32x64xbf16>
    %cst_22 = arith.constant dense<0.000000e+00> : vector<32x32xf32>
    %38 = tpu.matmul %37, %17, %cst_22 {dimension_numbers = #tpu.dot_dimension_numbers<[1], [0], [0], [1], [0, 0, 1, 1], [], []>} : vector<32x64xbf16>, vector<64x32xbf16>, vector<32x32xf32> -> vector<32x32xf32>
    %39 = vector.extract_strided_slice %19 {offsets = [1, 0], sizes = [1, 32], strides = [1, 1]} : vector<3x32xf32> to vector<1x32xf32>
    %40 = vector.broadcast %39 : vector<1x32xf32> to vector<32x32xf32>
    %41 = arith.addf %38, %40 : vector<32x32xf32>
    %42 = arith.mulf %41, %15 : vector<32x32xf32>
    %cst_23 = arith.constant 0.000000e+00 : f32
    %43 = vector.broadcast %cst_23 : f32 to vector<32x32xf32>
    %44 = arith.maximumf %42, %43 : vector<32x32xf32>
    %45 = arith.truncf %44 : vector<32x32xf32> to vector<32x32xbf16>
    %46 = tpu.concatenate %32, %45 in 1 : vector<32x32xbf16>, vector<32x32xbf16> -> vector<32x64xbf16>
    %cst_24 = arith.constant dense<0.000000e+00> : vector<32x32xf32>
    %47 = tpu.matmul %46, %18, %cst_24 {dimension_numbers = #tpu.dot_dimension_numbers<[1], [0], [0], [1], [0, 0, 1, 1], [], []>} : vector<32x64xbf16>, vector<64x32xbf16>, vector<32x32xf32> -> vector<32x32xf32>
    %48 = vector.extract_strided_slice %19 {offsets = [2, 0], sizes = [1, 32], strides = [1, 1]} : vector<3x32xf32> to vector<1x32xf32>
    %49 = vector.broadcast %48 : vector<1x32xf32> to vector<32x32xf32>
    %50 = arith.addf %47, %49 : vector<32x32xf32>
    %cst_25 = arith.constant 0.000000e+00 : f32
    %51 = vector.broadcast %cst_25 : f32 to vector<32x32xf32>
    %52 = arith.maximumf %50, %51 : vector<32x32xf32>
    %53 = arith.mulf %52, %15 : vector<32x32xf32>
    %54 = arith.truncf %53 : vector<32x32xf32> to vector<32x32xbf16>
    %55 = vector.shape_cast %54 : vector<32x32xbf16> to vector<2x16x32xbf16>
    %c0_26 = arith.constant 0 : index
    %c0_27 = arith.constant 0 : index
    %56 = vector.load %arg8[%c0_26, %c0_27] : memref<64x32xbf16, #tpu.memory_space<vmem>>, vector<64x32xbf16>
    %c0_28 = arith.constant 0 : index
    %c0_29 = arith.constant 0 : index
    %57 = vector.load %arg9[%c0_28, %c0_29] : memref<64x32xbf16, #tpu.memory_space<vmem>>, vector<64x32xbf16>
    %c0_30 = arith.constant 0 : index
    %c0_31 = arith.constant 0 : index
    %58 = vector.load %arg10[%c0_30, %c0_31] : memref<64x32xbf16, #tpu.memory_space<vmem>>, vector<64x32xbf16>
    %c0_32 = arith.constant 0 : index
    %c0_33 = arith.constant 0 : index
    %59 = vector.load %arg11[%c0_32, %c0_33] : memref<3x32xf32, #tpu.memory_space<vmem>>, vector<3x32xf32>
    %60 = vector.shape_cast %55 : vector<2x16x32xbf16> to vector<32x32xbf16>
    "tpu.trace_start"() <{level = 10 : i32, message = "gij,gjf->gif"}> : () -> ()
    %cst_34 = arith.constant dense<0.000000e+00> : vector<2x16x32xf32>
    %61 = tpu.matmul %11, %55, %cst_34 {dimension_numbers = #tpu.dot_dimension_numbers<[2], [1], [1], [2], [0, 0, 0, 1, 1, 2], [0], [0]>} : vector<2x16x16xbf16>, vector<2x16x32xbf16>, vector<2x16x32xf32> -> vector<2x16x32xf32>
    "tpu.trace_stop"() : () -> ()
    %62 = arith.truncf %61 : vector<2x16x32xf32> to vector<2x16x32xbf16>
    %63 = vector.shape_cast %62 : vector<2x16x32xbf16> to vector<32x32xbf16>
    %64 = tpu.concatenate %63, %60 in 1 : vector<32x32xbf16>, vector<32x32xbf16> -> vector<32x64xbf16>
    %cst_35 = arith.constant dense<0.000000e+00> : vector<32x32xf32>
    %65 = tpu.matmul %64, %56, %cst_35 {dimension_numbers = #tpu.dot_dimension_numbers<[1], [0], [0], [1], [0, 0, 1, 1], [], []>} : vector<32x64xbf16>, vector<64x32xbf16>, vector<32x32xf32> -> vector<32x32xf32>
    %66 = vector.extract_strided_slice %59 {offsets = [0, 0], sizes = [1, 32], strides = [1, 1]} : vector<3x32xf32> to vector<1x32xf32>
    %67 = vector.broadcast %66 : vector<1x32xf32> to vector<32x32xf32>
    %68 = arith.addf %65, %67 : vector<32x32xf32>
    %69 = arith.mulf %68, %15 : vector<32x32xf32>
    %cst_36 = arith.constant 0.000000e+00 : f32
    %70 = vector.broadcast %cst_36 : f32 to vector<32x32xf32>
    %71 = arith.maximumf %69, %70 : vector<32x32xf32>
    %72 = arith.truncf %71 : vector<32x32xf32> to vector<32x32xbf16>
    %73 = vector.shape_cast %72 : vector<32x32xbf16> to vector<2x16x32xbf16>
    "tpu.trace_start"() <{level = 10 : i32, message = "gij,gjf->gif"}> : () -> ()
    %cst_37 = arith.constant dense<0.000000e+00> : vector<2x16x32xf32>
    %74 = tpu.matmul %11, %73, %cst_37 {dimension_numbers = #tpu.dot_dimension_numbers<[2], [1], [1], [2], [0, 0, 0, 1, 1, 2], [0], [0]>} : vector<2x16x16xbf16>, vector<2x16x32xbf16>, vector<2x16x32xf32> -> vector<2x16x32xf32>
    "tpu.trace_stop"() : () -> ()
    %75 = arith.truncf %74 : vector<2x16x32xf32> to vector<2x16x32xbf16>
    %76 = vector.shape_cast %75 : vector<2x16x32xbf16> to vector<32x32xbf16>
    %77 = tpu.concatenate %76, %72 in 1 : vector<32x32xbf16>, vector<32x32xbf16> -> vector<32x64xbf16>
    %cst_38 = arith.constant dense<0.000000e+00> : vector<32x32xf32>
    %78 = tpu.matmul %77, %57, %cst_38 {dimension_numbers = #tpu.dot_dimension_numbers<[1], [0], [0], [1], [0, 0, 1, 1], [], []>} : vector<32x64xbf16>, vector<64x32xbf16>, vector<32x32xf32> -> vector<32x32xf32>
    %79 = vector.extract_strided_slice %59 {offsets = [1, 0], sizes = [1, 32], strides = [1, 1]} : vector<3x32xf32> to vector<1x32xf32>
    %80 = vector.broadcast %79 : vector<1x32xf32> to vector<32x32xf32>
    %81 = arith.addf %78, %80 : vector<32x32xf32>
    %82 = arith.mulf %81, %15 : vector<32x32xf32>
    %cst_39 = arith.constant 0.000000e+00 : f32
    %83 = vector.broadcast %cst_39 : f32 to vector<32x32xf32>
    %84 = arith.maximumf %82, %83 : vector<32x32xf32>
    %85 = arith.truncf %84 : vector<32x32xf32> to vector<32x32xbf16>
    %86 = tpu.concatenate %72, %85 in 1 : vector<32x32xbf16>, vector<32x32xbf16> -> vector<32x64xbf16>
    %cst_40 = arith.constant dense<0.000000e+00> : vector<32x32xf32>
    %87 = tpu.matmul %86, %58, %cst_40 {dimension_numbers = #tpu.dot_dimension_numbers<[1], [0], [0], [1], [0, 0, 1, 1], [], []>} : vector<32x64xbf16>, vector<64x32xbf16>, vector<32x32xf32> -> vector<32x32xf32>
    %88 = vector.extract_strided_slice %59 {offsets = [2, 0], sizes = [1, 32], strides = [1, 1]} : vector<3x32xf32> to vector<1x32xf32>
    %89 = vector.broadcast %88 : vector<1x32xf32> to vector<32x32xf32>
    %90 = arith.addf %87, %89 : vector<32x32xf32>
    %cst_41 = arith.constant 0.000000e+00 : f32
    %91 = vector.broadcast %cst_41 : f32 to vector<32x32xf32>
    %92 = arith.maximumf %90, %91 : vector<32x32xf32>
    %93 = arith.mulf %92, %15 : vector<32x32xf32>
    %94 = vector.shape_cast %53 : vector<32x32xf32> to vector<2x16x32xf32>
    %cst_42 = arith.constant dense<0.000000e+00> : vector<2x32xf32>
    %95 = vector.multi_reduction <add>, %94, %cst_42 [1] : vector<2x16x32xf32> to vector<2x32xf32>
    %96 = vector.shape_cast %93 : vector<32x32xf32> to vector<2x16x32xf32>
    %cst_43 = arith.constant dense<0.000000e+00> : vector<2x32xf32>
    %97 = vector.multi_reduction <add>, %96, %cst_43 [1] : vector<2x16x32xf32> to vector<2x32xf32>
    %98 = tpu.concatenate %95, %97 in 1 : vector<2x32xf32>, vector<2x32xf32> -> vector<2x64xf32>
    %c0_44 = arith.constant 0 : index
    %c0_45 = arith.constant 0 : index
    %99 = vector.load %arg12[%c0_44, %c0_45] : memref<64x32xf32, #tpu.memory_space<vmem>>, vector<64x32xf32>
    %cst_46 = arith.constant dense<0.000000e+00> : vector<2x32xf32>
    %100 = tpu.matmul %98, %99, %cst_46 {dimension_numbers = #tpu.dot_dimension_numbers<[1], [0], [0], [1], [0, 0, 1, 1], [], []>} : vector<2x64xf32>, vector<64x32xf32>, vector<2x32xf32> -> vector<2x32xf32>
    %c0_47 = arith.constant 0 : index
    %c0_48 = arith.constant 0 : index
    %101 = vector.load %arg13[%c0_47, %c0_48] : memref<1x32xf32, #tpu.memory_space<vmem>>, vector<1x32xf32>
    %102 = vector.broadcast %101 : vector<1x32xf32> to vector<2x32xf32>
    %103 = arith.addf %100, %102 : vector<2x32xf32>
    %cst_49 = arith.constant 0.000000e+00 : f32
    %104 = vector.broadcast %cst_49 : f32 to vector<2x32xf32>
    %105 = arith.maximumf %103, %104 : vector<2x32xf32>
    %c0_50 = arith.constant 0 : index
    %c0_51 = arith.constant 0 : index
    %106 = vector.load %arg14[%c0_50, %c0_51] : memref<32x4xf32, #tpu.memory_space<vmem>>, vector<32x4xf32>
    %cst_52 = arith.constant dense<0.000000e+00> : vector<2x4xf32>
    %107 = tpu.matmul %105, %106, %cst_52 {dimension_numbers = #tpu.dot_dimension_numbers<[1], [0], [0], [1], [0, 0, 1, 1], [], []>} : vector<2x32xf32>, vector<32x4xf32>, vector<2x4xf32> -> vector<2x4xf32>
    %c0_53 = arith.constant 0 : index
    %c0_54 = arith.constant 0 : index
    %108 = vector.load %arg15[%c0_53, %c0_54] : memref<1x4xf32, #tpu.memory_space<vmem>>, vector<1x4xf32>
    %109 = vector.broadcast %108 : vector<1x4xf32> to vector<2x4xf32>
    %110 = arith.addf %107, %109 : vector<2x4xf32>
    %cst_55 = arith.constant dense<0xFF800000> : vector<2xf32>
    %111 = vector.multi_reduction <maximumf>, %110, %cst_55 [1] : vector<2x4xf32> to vector<2xf32>
    %112 = vector.shape_cast %111 : vector<2xf32> to vector<2x1xf32>
    %113 = vector.broadcast %112 : vector<2x1xf32> to vector<2x4xf32>
    %114 = arith.subf %110, %113 : vector<2x4xf32>
    %115 = math.exp %114 : vector<2x4xf32>
    %cst_56 = arith.constant dense<0.000000e+00> : vector<2xf32>
    %116 = vector.multi_reduction <add>, %115, %cst_56 [1] : vector<2x4xf32> to vector<2xf32>
    %117 = vector.shape_cast %116 : vector<2xf32> to vector<2x1xf32>
    %118 = vector.broadcast %117 : vector<2x1xf32> to vector<2x4xf32>
    %119 = arith.divf %115, %118 : vector<2x4xf32>
    %120 = vector.shape_cast %119 : vector<2x4xf32> to vector<2x1x4xf32>
    %c0_57 = arith.constant 0 : index
    %c0_58 = arith.constant 0 : index
    %c0_59 = arith.constant 0 : index
    %121 = vector.load %arg16[%c0_57, %c0_58, %c0_59] : memref<2x1x4xf32, #tpu.memory_space<vmem>>, vector<2x1x4xf32>
    tpu.vector_store %arg16[%c0_57, %c0_58, %c0_59], %120 {strides = array<i32>} : memref<2x1x4xf32, #tpu.memory_space<vmem>>, vector<2x1x4xf32>,
    return
  }
  func.func @transform_0(%arg0: i32) -> (i32, i32, i32) {
    %c0_i32 = arith.constant 0 : i32
    %c0_i32_0 = arith.constant 0 : i32
    %c0_i32_1 = arith.constant 0 : i32
    return %arg0, %c0_i32, %c0_i32_0 : i32, i32, i32
  }
  func.func @transform_1(%arg0: i32) -> (i32, i32, i32) {
    %c0_i32 = arith.constant 0 : i32
    %c0_i32_0 = arith.constant 0 : i32
    %c0_i32_1 = arith.constant 0 : i32
    return %arg0, %c0_i32, %c0_i32_0 : i32, i32, i32
  }
  func.func @transform_2(%arg0: i32) -> (i32, i32, i32) {
    %c0_i32 = arith.constant 0 : i32
    %c0_i32_0 = arith.constant 0 : i32
    %c0_i32_1 = arith.constant 0 : i32
    return %arg0, %c0_i32, %c0_i32_0 : i32, i32, i32
  }
  func.func @transform_3(%arg0: i32) -> (i32, i32) {
    %c0_i32 = arith.constant 0 : i32
    %c0_i32_0 = arith.constant 0 : i32
    %c0_i32_1 = arith.constant 0 : i32
    return %c0_i32, %c0_i32_0 : i32, i32
  }
  func.func @transform_4(%arg0: i32) -> (i32, i32) {
    %c0_i32 = arith.constant 0 : i32
    %c0_i32_0 = arith.constant 0 : i32
    %c0_i32_1 = arith.constant 0 : i32
    return %c0_i32, %c0_i32_0 : i32, i32
  }
  func.func @transform_5(%arg0: i32) -> (i32, i32) {
    %c0_i32 = arith.constant 0 : i32
    %c0_i32_0 = arith.constant 0 : i32
    %c0_i32_1 = arith.constant 0 : i32
    return %c0_i32, %c0_i32_0 : i32, i32
  }
  func.func @transform_6(%arg0: i32) -> (i32, i32) {
    %c0_i32 = arith.constant 0 : i32
    %c0_i32_0 = arith.constant 0 : i32
    %c0_i32_1 = arith.constant 0 : i32
    return %c0_i32, %c0_i32_0 : i32, i32
  }
  func.func @transform_7(%arg0: i32) -> (i32, i32) {
    %c0_i32 = arith.constant 0 : i32
    %c0_i32_0 = arith.constant 0 : i32
    %c0_i32_1 = arith.constant 0 : i32
    return %c0_i32, %c0_i32_0 : i32, i32
  }
  func.func @transform_8(%arg0: i32) -> (i32, i32) {
    %c0_i32 = arith.constant 0 : i32
    %c0_i32_0 = arith.constant 0 : i32
    %c0_i32_1 = arith.constant 0 : i32
    return %c0_i32, %c0_i32_0 : i32, i32
  }
  func.func @transform_9(%arg0: i32) -> (i32, i32) {
    %c0_i32 = arith.constant 0 : i32
    %c0_i32_0 = arith.constant 0 : i32
    %c0_i32_1 = arith.constant 0 : i32
    return %c0_i32, %c0_i32_0 : i32, i32
  }
  func.func @transform_10(%arg0: i32) -> (i32, i32) {
    %c0_i32 = arith.constant 0 : i32
    %c0_i32_0 = arith.constant 0 : i32
    %c0_i32_1 = arith.constant 0 : i32
    return %c0_i32, %c0_i32_0 : i32, i32
  }
  func.func @transform_11(%arg0: i32) -> (i32, i32) {
    %c0_i32 = arith.constant 0 : i32
    %c0_i32_0 = arith.constant 0 : i32
    %c0_i32_1 = arith.constant 0 : i32
    return %c0_i32, %c0_i32_0 : i32, i32
  }
  func.func @transform_12(%arg0: i32) -> (i32, i32) {
    %c0_i32 = arith.constant 0 : i32
    %c0_i32_0 = arith.constant 0 : i32
    %c0_i32_1 = arith.constant 0 : i32
    return %c0_i32, %c0_i32_0 : i32, i32
  }
  func.func @transform_13(%arg0: i32) -> (i32, i32) {
    %c0_i32 = arith.constant 0 : i32
    %c0_i32_0 = arith.constant 0 : i32
    %c0_i32_1 = arith.constant 0 : i32
    return %c0_i32, %c0_i32_0 : i32, i32
  }
  func.func @transform_14(%arg0: i32) -> (i32, i32) {
    %c0_i32 = arith.constant 0 : i32
    %c0_i32_0 = arith.constant 0 : i32
    %c0_i32_1 = arith.constant 0 : i32
    return %c0_i32, %c0_i32_0 : i32, i32
  }
  func.func @transform_15(%arg0: i32) -> (i32, i32, i32) {
    %c0_i32 = arith.constant 0 : i32
    %c0_i32_0 = arith.constant 0 : i32
    %c0_i32_1 = arith.constant 0 : i32
    return %arg0, %c0_i32, %c0_i32_0 : i32, i32, i32
  }
}

</mosaic_0001>

<llo_original>
// kernel: baseline_model_forward.1
$region0: #{baseline_model_forward.1}
  #allocation0 [shape = 'u32[]', space=smem, size = 0x4, offset = 0x4, fixed_abs, tag = 'smem constant byte address 0x4 - core index']
  #allocation1 [shape = 'u32[144,128]{1,0:T(1,128)}', space=vmem, size = 0x12000, scoped, tag = 'internal scratch']
  %s0 = inlined_call_operand.vmem [shape: bf16[2,16,8], index: 0, kind: input, shape index: {}]
  %s1 = inlined_call_operand.vmem [shape: bf16[2,16,16], index: 1, kind: input, shape index: {}]
  %s2 = inlined_call_operand.vmem [shape: f32[2,16,1], index: 2, kind: input, shape index: {}]
  %s3 = inlined_call_operand.vmem [shape: bf16[16,32], index: 3, kind: input, shape index: {}]
  %s4 = inlined_call_operand.vmem [shape: bf16[64,32], index: 4, kind: input, shape index: {}]
  %s5 = inlined_call_operand.vmem [shape: bf16[64,32], index: 5, kind: input, shape index: {}]
  %s6 = inlined_call_operand.vmem [shape: f32[3,32], index: 6, kind: input, shape index: {}]
  %s7 = inlined_call_operand.vmem [shape: bf16[64,32], index: 7, kind: input, shape index: {}]
  %s8 = inlined_call_operand.vmem [shape: bf16[64,32], index: 8, kind: input, shape index: {}]
  %s9 = inlined_call_operand.vmem [shape: bf16[64,32], index: 9, kind: input, shape index: {}]
  %s10 = inlined_call_operand.vmem [shape: f32[3,32], index: 10, kind: input, shape index: {}]
  %s11 = inlined_call_operand.vmem [shape: f32[64,32], index: 11, kind: input, shape index: {}]
  %s12 = inlined_call_operand.vmem [shape: f32[1,32], index: 12, kind: input, shape index: {}]
  %s13 = inlined_call_operand.vmem [shape: f32[32,4], index: 13, kind: input, shape index: {}]
  %s14 = inlined_call_operand.vmem [shape: f32[1,4], index: 14, kind: input, shape index: {}]
  %s15 = inlined_call_operand.hbm [shape: f32[2,1,4], index: 15, kind: output, shape index: {}]
  %s16 = sld [smem:[#allocation0]]
  $region70: #{baseline_model_forward.1} parent=0
    _
  %s18 = ssub.s32 1, %s16
  %s19 = scalar_select 0, %s18, %s16
  $region1: #{baseline_model_forward.1} parent=0
    #allocation2 [shape = 'u8[1024]{0}', space=vmem, size = 0x400, scoped, tag = 'output window, operand 0, single buffered']
    #allocation3 [shape = 's32[1]{0}', space=sflag, size = 0x4, scoped, tag = 'scoped memory for baseline_model_forward.1']
    %20 = vsyncpa [#allocation3], 0
    // Predicated region
    $region2: #{baseline_model_forward.1} parent=1 // pred_check
      _
    $region3: #{baseline_model_forward.1} parent=1 // pred_check_branch
      %22 = sbr.rel (0) target = $region5
    $region4: #{baseline_model_forward.1} parent=1 // pred_region
      _
    $region5: #{baseline_model_forward.1} parent=1 // pred_fallthru
      _
    // Predicated region
    $region6: #{baseline_model_forward.1} parent=1 // pred_check
      _
    $region7: #{baseline_model_forward.1} parent=1 // pred_check_branch
      %24 = sbr.rel (0) target = $region9
    $region8: #{baseline_model_forward.1} parent=1 // pred_region
      _
    $region9: #{baseline_model_forward.1} parent=1 // pred_fallthru
      _
    // Predicated region
    $region10: #{baseline_model_forward.1} parent=1 // pred_check
      _
    $region11: #{baseline_model_forward.1} parent=1 // pred_check_branch
      %26 = sbr.rel (0) target = $region13
    $region12: #{baseline_model_forward.1} parent=1 // pred_region
      _
    $region13: #{baseline_model_forward.1} parent=1 // pred_fallthru
      _
    // Predicated region
    $region14: #{baseline_model_forward.1} parent=1 // pred_check
      _
    $region15: #{baseline_model_forward.1} parent=1 // pred_check_branch
      %28 = sbr.rel (0) target = $region17
    $region16: #{baseline_model_forward.1} parent=1 // pred_region
      _
    $region17: #{baseline_model_forward.1} parent=1 // pred_fallthru
      _
    // Predicated region
    $region18: #{baseline_model_forward.1} parent=1 // pred_check
      _
    $region19: #{baseline_model_forward.1} parent=1 // pred_check_branch
      %30 = sbr.rel (0) target = $region21
    $region20: #{baseline_model_forward.1} parent=1 // pred_region
      _
    $region21: #{baseline_model_forward.1} parent=1 // pred_fallthru
      _
    // Predicated region
    $region22: #{baseline_model_forward.1} parent=1 // pred_check
      _
    $region23: #{baseline_model_forward.1} parent=1 // pred_check_branch
      %32 = sbr.rel (0) target = $region25
    $region24: #{baseline_model_forward.1} parent=1 // pred_region
      _
    $region25: #{baseline_model_forward.1} parent=1 // pred_fallthru
      _
    // Predicated region
    $region26: #{baseline_model_forward.1} parent=1 // pred_check
      _
    $region27: #{baseline_model_forward.1} parent=1 // pred_check_branch
      %34 = sbr.rel (0) target = $region29
    $region28: #{baseline_model_forward.1} parent=1 // pred_region
      _
    $region29: #{baseline_model_forward.1} parent=1 // pred_fallthru
      _
    // Predicated region
    $region30: #{baseline_model_forward.1} parent=1 // pred_check
      _
    $region31: #{baseline_model_forward.1} parent=1 // pred_check_branch
      %36 = sbr.rel (0) target = $region33
    $region32: #{baseline_model_forward.1} parent=1 // pred_region
      _
    $region33: #{baseline_model_forward.1} parent=1 // pred_fallthru
      _
    // Predicated region
    $region34: #{baseline_model_forward.1} parent=1 // pred_check
      _
    $region35: #{baseline_model_forward.1} parent=1 // pred_check_branch
      %38 = sbr.rel (0) target = $region37
    $region36: #{baseline_model_forward.1} parent=1 // pred_region
      _
    $region37: #{baseline_model_forward.1} parent=1 // pred_fallthru
      _
    // Predicated region
    $region38: #{baseline_model_forward.1} parent=1 // pred_check
      _
    $region39: #{baseline_model_forward.1} parent=1 // pred_check_branch
      %40 = sbr.rel (0) target = $region41
    $region40: #{baseline_model_forward.1} parent=1 // pred_region
      _
    $region41: #{baseline_model_forward.1} parent=1 // pred_fallthru
      _
    // Predicated region
    $region42: #{baseline_model_forward.1} parent=1 // pred_check
      _
    $region43: #{baseline_model_forward.1} parent=1 // pred_check_branch
      %42 = sbr.rel (0) target = $region45
    $region44: #{baseline_model_forward.1} parent=1 // pred_region
      _
    $region45: #{baseline_model_forward.1} parent=1 // pred_fallthru
      _
    // Predicated region
    $region46: #{baseline_model_forward.1} parent=1 // pred_check
      _
    $region47: #{baseline_model_forward.1} parent=1 // pred_check_branch
      %44 = sbr.rel (0) target = $region49
    $region48: #{baseline_model_forward.1} parent=1 // pred_region
      _
    $region49: #{baseline_model_forward.1} parent=1 // pred_fallthru
      _
    // Predicated region
    $region50: #{baseline_model_forward.1} parent=1 // pred_check
      _
    $region51: #{baseline_model_forward.1} parent=1 // pred_check_branch
      %46 = sbr.rel (0) target = $region53
    $region52: #{baseline_model_forward.1} parent=1 // pred_region
      _
    $region53: #{baseline_model_forward.1} parent=1 // pred_fallthru
      _
    // Predicated region
    $region54: #{baseline_model_forward.1} parent=1 // pred_check
      _
    $region55: #{baseline_model_forward.1} parent=1 // pred_check_branch
      %48 = sbr.rel (0) target = $region57
    $region56: #{baseline_model_forward.1} parent=1 // pred_region
      _
    $region57: #{baseline_model_forward.1} parent=1 // pred_fallthru
      _
    // Predicated region
    $region58: #{baseline_model_forward.1} parent=1 // pred_check
      _
    $region59: #{baseline_model_forward.1} parent=1 // pred_check_branch
      %50 = sbr.rel (0) target = $region61
    $region60: #{baseline_model_forward.1} parent=1 // pred_region
      _
    $region61: #{baseline_model_forward.1} parent=1 // pred_fallthru
      _
    %v52 = vld [vmem:[%s0] sm:$0xf]
    %v53 = vld [vmem:[%s0 + $0x4] sm:$0xf]
    %v54 = vld [vmem:[%s0 + $0x8] sm:$0xf]
    %v55 = vld [vmem:[%s0 + $0xc] sm:$0xf]
    %v56 = vld [vmem:[%s1] sm:$0xf]
    %v57 = vld [vmem:[%s1 + $0x4] sm:$0xf]
    %v58 = vld [vmem:[%s1 + $0x8] sm:$0xf]
    %v59 = vld [vmem:[%s1 + $0xc] sm:$0xf]
    %v60 = vunpack.c.l.bf16 %v56
    %v61 = vunpack.c.l.bf16 %v57
    %v62 = vunpack.c.l.bf16 %v58
    %v63 = vunpack.c.l.bf16 %v59
    %vm64 = vcmask 130048
    %v65 = vsel %vm64, %v60, 0.0
    %66 = vadd.xlane.f32.xlu0 %v65
    %v67 = vpop.xlane.xlu0 %66
    %v68 = vsel %vm64, %v61, 0.0
    %69 = vadd.xlane.f32.xlu0 %v68
    %v70 = vpop.xlane.xlu0 %69
    %v71 = vsel %vm64, %v62, 0.0
    %72 = vadd.xlane.f32.xlu0 %v71
    %v73 = vpop.xlane.xlu0 %72
    %v74 = vsel %vm64, %v63, 0.0
    %75 = vadd.xlane.f32.xlu0 %v74
    %v76 = vpop.xlane.xlu0 %75
    %v77 = vmax.f32 %v67, 1.0
    %v78 = vmax.f32 %v70, 1.0
    %v79 = vmax.f32 %v73, 1.0
    %v80 = vmax.f32 %v76, 1.0
    %v81 = vrcp.pop %v77
    %v82 = vmul.f32 1.0, %v81
    %v83 = vrcp.pop %v78
    %v84 = vmul.f32 1.0, %v83
    %v85 = vrcp.pop %v79
    %v86 = vmul.f32 1.0, %v85
    %v87 = vrcp.pop %v80
    %v88 = vmul.f32 1.0, %v87
    %v89 = vmul.f32 %v60, %v82
    %v90 = vmul.f32 %v61, %v84
    %v91 = vmul.f32 %v62, %v86
    %v92 = vmul.f32 %v63, %v88
    %v93 = vpack.c.bf16 %v90, %v89
    %v94 = vpack.c.bf16 %v92, %v91
    %v95 = vld [vmem:[%s2] sm:$0xff]
    %v96 = vld [vmem:[%s2 + $0x8] sm:$0xff]
    %v97 = vld [vmem:[%s2 + $0x10] sm:$0xff]
    %v98 = vld [vmem:[%s2 + $0x18] sm:$0xff]
    %100 = vset.pattern.permute.xlu0 0
    %101 = vperm.xlu0 %100, %v95
    %v102 = vpop.permute.xlu0 %101
    %105 = vset.pattern.permute.xlu0 0
    %106 = vperm.xlu0 %105, %v96
    %v107 = vpop.permute.xlu0 %106
    %110 = vset.pattern.permute.xlu0 0
    %111 = vperm.xlu0 %110, %v97
    %v112 = vpop.permute.xlu0 %111
    %115 = vset.pattern.permute.xlu0 0
    %116 = vperm.xlu0 %115, %v98
    %v117 = vpop.permute.xlu0 %116
    %v119 = vld [vmem:[%s3] sm:$0xf]
    %v120 = vld [vmem:[%s3 + $0x4] sm:$0xf]
    %v121 = vld [vmem:[%s4] sm:$0xf]
    %v122 = vld [vmem:[%s4 + $0x4] sm:$0xf]
    %v123 = vld [vmem:[%s4 + $0x8] sm:$0xf]
    %v124 = vld [vmem:[%s4 + $0xc] sm:$0xf]
    %v125 = vld [vmem:[%s4 + $0x10] sm:$0xf]
    %v126 = vld [vmem:[%s4 + $0x14] sm:$0xf]
    %v127 = vld [vmem:[%s4 + $0x18] sm:$0xf]
    %v128 = vld [vmem:[%s4 + $0x1c] sm:$0xf]
    %v129 = vld [vmem:[%s5] sm:$0xf]
    %v130 = vld [vmem:[%s5 + $0x4] sm:$0xf]
    %v131 = vld [vmem:[%s5 + $0x8] sm:$0xf]
    %v132 = vld [vmem:[%s5 + $0xc] sm:$0xf]
    %v133 = vld [vmem:[%s5 + $0x10] sm:$0xf]
    %v134 = vld [vmem:[%s5 + $0x14] sm:$0xf]
    %v135 = vld [vmem:[%s5 + $0x18] sm:$0xf]
    %v136 = vld [vmem:[%s5 + $0x1c] sm:$0xf]
    %v137 = vld [vmem:[%s6] sm:$0x7]
    %v140 = vunpack.c.l.b16 %v52
    %v141 = vunpack.c.l.b16 %v53
    %v142 = vpack.c.b16 %v141, %v140
    %v145 = vsel %vm64, %v93, 0
    %147 = vmatprep.subr.bf16.mxu0 0
    %148 = vmatpush1.bf16.msra.mxu0 %v142
    %149 = vmatprep.subr.bf16.mxu0 0
    %150 = vmatpush1.bf16.msra.mxu0 0
    %151 = vmatprep.subr.bf16.mxu0 0
    %152 = vmatpush1.bf16.msra.mxu0 0
    %153 = vmatprep.subr.bf16.mxu0 0
    %154 = vmatpush1.bf16.msra.mxu0 0
    %155 = vmatprep.subr.bf16.mxu0 0
    %156 = vmatpush1.bf16.msra.mxu0 0
    %157 = vmatprep.subr.bf16.mxu0 0
    %158 = vmatpush1.bf16.msra.mxu0 0
    %159 = vmatprep.subr.bf16.mxu0 0
    %160 = vmatpush1.bf16.msra.mxu0 0
    %161 = vmatprep.subr.bf16.mxu0 0
    %162 = vmatpush1.bf16.msra.mxu0 0
    %163 = vmatprep.subr.bf16.mxu0 0
    %164 = vmatpush1.bf16.msra.mxu0 0
    %165 = vmatprep.subr.bf16.mxu0 0
    %166 = vmatpush1.bf16.msra.mxu0 0
    %167 = vmatprep.subr.bf16.mxu0 0
    %168 = vmatpush1.bf16.msra.mxu0 0
    %169 = vmatprep.subr.bf16.mxu0 0
    %170 = vmatpush1.bf16.msra.mxu0 0
    %171 = vmatprep.subr.bf16.mxu0 0
    %172 = vmatpush1.bf16.msra.mxu0 0
    %173 = vmatprep.subr.bf16.mxu0 0
    %174 = vmatpush1.bf16.msra.mxu0 0
    %175 = vmatprep.subr.bf16.mxu0 0
    %176 = vmatpush1.bf16.msra.mxu0 0
    %177 = vmatprep.subr.bf16.mxu0 0
    %178 = vmatpush1.bf16.msra.mxu0 0
    %179 = vmatprep.mubr.bf16.mxu0 0
    %180 = vmatmul.mubr.bf16.gmra.mrb[0].mxu0 %v145
    %v181 = vpop.f32.mrb[0].mxu0
    %v182 = vadd.f32 0.0, %v181
    %v183 = vpop.f32.mrb[0].mxu0
    %v184 = vpop.f32.mrb[0].mxu0
    %v185 = vadd.f32 0.0, %v184
    %v186 = vpop.f32.mrb[0].mxu0
    %187 = vdwg.mxu0
    %v190 = vunpack.c.l.b16 %v54
    %v191 = vunpack.c.l.b16 %v55
    %v192 = vpack.c.b16 %v191, %v190
    %v195 = vsel %vm64, %v94, 0
    %197 = vmatprep.subr.bf16.mxu0 0
    %198 = vmatpush1.bf16.msra.mxu0 %v192
    %199 = vmatprep.subr.bf16.mxu0 0
    %200 = vmatpush1.bf16.msra.mxu0 0
    %201 = vmatprep.subr.bf16.mxu0 0
    %202 = vmatpush1.bf16.msra.mxu0 0
    %203 = vmatprep.subr.bf16.mxu0 0
    %204 = vmatpush1.bf16.msra.mxu0 0
    %205 = vmatprep.subr.bf16.mxu0 0
    %206 = vmatpush1.bf16.msra.mxu0 0
    %207 = vmatprep.subr.bf16.mxu0 0
    %208 = vmatpush1.bf16.msra.mxu0 0
    %209 = vmatprep.subr.bf16.mxu0 0
    %210 = vmatpush1.bf16.msra.mxu0 0
    %211 = vmatprep.subr.bf16.mxu0 0
    %212 = vmatpush1.bf16.msra.mxu0 0
    %213 = vmatprep.subr.bf16.mxu0 0
    %214 = vmatpush1.bf16.msra.mxu0 0
    %215 = vmatprep.subr.bf16.mxu0 0
    %216 = vmatpush1.bf16.msra.mxu0 0
    %217 = vmatprep.subr.bf16.mxu0 0
    %218 = vmatpush1.bf16.msra.mxu0 0
    %219 = vmatprep.subr.bf16.mxu0 0
    %220 = vmatpush1.bf16.msra.mxu0 0
    %221 = vmatprep.subr.bf16.mxu0 0
    %222 = vmatpush1.bf16.msra.mxu0 0
    %223 = vmatprep.subr.bf16.mxu0 0
    %224 = vmatpush1.bf16.msra.mxu0 0
    %225 = vmatprep.subr.bf16.mxu0 0
    %226 = vmatpush1.bf16.msra.mxu0 0
    %227 = vmatprep.subr.bf16.mxu0 0
    %228 = vmatpush1.bf16.msra.mxu0 0
    %229 = vmatprep.mubr.bf16.mxu0 0
    %230 = vmatmul.mubr.bf16.gmra.mrb[0].mxu0 %v195
    %v231 = vpop.f32.mrb[0].mxu0
    %v232 = vadd.f32 0.0, %v231
    %v233 = vpop.f32.mrb[0].mxu0
    %v234 = vpop.f32.mrb[0].mxu0
    %v235 = vadd.f32 0.0, %v234
    %v236 = vpop.f32.mrb[0].mxu0
    %237 = vdwg.mxu0
    %v238 = vpack.c.bf16 %v185, %v182
    %v239 = vpack.c.bf16 %v235, %v232
    %240 = vrot.lane.b32.xlu0 %v142, 8
    %v241 = vpop.permute.xlu0 %240
    %242 = vrot.lane.b32.xlu0 %v192, 8
    %v243 = vpop.permute.xlu0 %242
    %vm244 = vcmask 64512
    %v247 = vsel %vm244, %v238, %v241
    %v250 = vsel %vm244, %v239, %v243
    %v251 = vlaneseq
    %v252 = vshrl.u32 %v251, 7
    %v253 = vsub.s32 0, %v252
    %v254 = vrot.slane %v137, %v253
    %v257 = vunpack.c.l.b16 %v119
    %v258 = vunpack.c.l.b16 %v120
    %v259 = vpack.c.b16 %v258, %v257
    %v261 = vsel %vm64, %v247, 0
    %v263 = vsel %vm64, %v250, 0
    %265 = vmatprep.subr.bf16.mxu0 0
    %266 = vmatpush1.bf16.msra.mxu0 %v259
    %267 = vmatprep.subr.bf16.mxu0 0
    %268 = vmatpush1.bf16.msra.mxu0 0
    %269 = vmatprep.subr.bf16.mxu0 0
    %270 = vmatpush1.bf16.msra.mxu0 0
    %271 = vmatprep.subr.bf16.mxu0 0
    %272 = vmatpush1.bf16.msra.mxu0 0
    %273 = vmatprep.subr.bf16.mxu0 0
    %274 = vmatpush1.bf16.msra.mxu0 0
    %275 = vmatprep.subr.bf16.mxu0 0
    %276 = vmatpush1.bf16.msra.mxu0 0
    %277 = vmatprep.subr.bf16.mxu0 0
    %278 = vmatpush1.bf16.msra.mxu0 0
    %279 = vmatprep.subr.bf16.mxu0 0
    %280 = vmatpush1.bf16.msra.mxu0 0
    %281 = vmatprep.subr.bf16.mxu0 0
    %282 = vmatpush1.bf16.msra.mxu0 0
    %283 = vmatprep.subr.bf16.mxu0 0
    %284 = vmatpush1.bf16.msra.mxu0 0
    %285 = vmatprep.subr.bf16.mxu0 0
    %286 = vmatpush1.bf16.msra.mxu0 0
    %287 = vmatprep.subr.bf16.mxu0 0
    %288 = vmatpush1.bf16.msra.mxu0 0
    %289 = vmatprep.subr.bf16.mxu0 0
    %290 = vmatpush1.bf16.msra.mxu0 0
    %291 = vmatprep.subr.bf16.mxu0 0
    %292 = vmatpush1.bf16.msra.mxu0 0
    %293 = vmatprep.subr.bf16.mxu0 0
    %294 = vmatpush1.bf16.msra.mxu0 0
    %295 = vmatprep.subr.bf16.mxu0 0
    %296 = vmatpush1.bf16.msra.mxu0 0
    %297 = vmatprep.mubr.bf16.mxu0 0
    %298 = vmatmul.mubr.bf16.gmra.mrb[0].mxu0 %v261
    %v299 = vpop.f32.mrb[0].mxu0
    %v300 = vadd.f32 %v254, %v299
    %v301 = vpop.f32.mrb[0].mxu0
    %v302 = vpop.f32.mrb[0].mxu0
    %v303 = vadd.f32 %v254, %v302
    %v304 = vpop.f32.mrb[0].mxu0
    %305 = vmatprep.mubr.bf16.mxu0 0
    %306 = vmatmul.mubr.bf16.gmra.mrb[0].mxu0 %v263
    %v307 = vpop.f32.mrb[0].mxu0
    %v308 = vadd.f32 %v254, %v307
    %v309 = vpop.f32.mrb[0].mxu0
    %v310 = vpop.f32.mrb[0].mxu0
    %v311 = vadd.f32 %v254, %v310
    %v312 = vpop.f32.mrb[0].mxu0
    %313 = vdwg.mxu0
    %v314 = vmul.f32 %v300, %v102
    %v315 = vmul.f32 %v303, %v107
    %v316 = vmul.f32 %v308, %v112
    %v317 = vmul.f32 %v311, %v117
    %v318 = vmax.f32 %v314, 0.0
    %v319 = vmax.f32 %v315, 0.0
    %v320 = vmax.f32 %v316, 0.0
    %v321 = vmax.f32 %v317, 0.0
    %v322 = vpack.c.bf16 %v319, %v318
    %v323 = vpack.c.bf16 %v321, %v320
    %324 = vmatprep.subr.bf16.mxu0 0
    %325 = vmatpush1.bf16.msra.mxu0 %v322
    %326 = vmatprep.subr.bf16.mxu0 0
    %327 = vmatpush1.bf16.msra.mxu0 0
    %328 = vmatprep.subr.bf16.mxu0 0
    %329 = vmatpush1.bf16.msra.mxu0 0
    %330 = vmatprep.subr.bf16.mxu0 0
    %331 = vmatpush1.bf16.msra.mxu0 0
    %332 = vmatprep.subr.bf16.mxu0 0
    %333 = vmatpush1.bf16.msra.mxu0 0
    %334 = vmatprep.subr.bf16.mxu0 0
    %335 = vmatpush1.bf16.msra.mxu0 0
    %336 = vmatprep.subr.bf16.mxu0 0
    %337 = vmatpush1.bf16.msra.mxu0 0
    %338 = vmatprep.subr.bf16.mxu0 0
    %339 = vmatpush1.bf16.msra.mxu0 0
    %340 = vmatprep.subr.bf16.mxu0 0
    %341 = vmatpush1.bf16.msra.mxu0 0
    %342 = vmatprep.subr.bf16.mxu0 0
    %343 = vmatpush1.bf16.msra.mxu0 0
    %344 = vmatprep.subr.bf16.mxu0 0
    %345 = vmatpush1.bf16.msra.mxu0 0
    %346 = vmatprep.subr.bf16.mxu0 0
    %347 = vmatpush1.bf16.msra.mxu0 0
    %348 = vmatprep.subr.bf16.mxu0 0
    %349 = vmatpush1.bf16.msra.mxu0 0
    %350 = vmatprep.subr.bf16.mxu0 0
    %351 = vmatpush1.bf16.msra.mxu0 0
    %352 = vmatprep.subr.bf16.mxu0 0
    %353 = vmatpush1.bf16.msra.mxu0 0
    %354 = vmatprep.subr.bf16.mxu0 0
    %355 = vmatpush1.bf16.msra.mxu0 0
    %356 = vmatprep.mubr.bf16.mxu0 0
    %357 = vmatmul.mubr.bf16.gmra.mrb[0].mxu0 %v145
    %v358 = vpop.f32.mrb[0].mxu0
    %v359 = vadd.f32 0.0, %v358
    %v360 = vpop.f32.mrb[0].mxu0
    %v361 = vpop.f32.mrb[0].mxu0
    %v362 = vadd.f32 0.0, %v361
    %v363 = vpop.f32.mrb[0].mxu0
    %364 = vdwg.mxu0
    %365 = vmatprep.subr.bf16.mxu0 0
    %366 = vmatpush1.bf16.msra.mxu0 %v323
    %367 = vmatprep.subr.bf16.mxu0 0
    %368 = vmatpush1.bf16.msra.mxu0 0
    %369 = vmatprep.subr.bf16.mxu0 0
    %370 = vmatpush1.bf16.msra.mxu0 0
    %371 = vmatprep.subr.bf16.mxu0 0
    %372 = vmatpush1.bf16.msra.mxu0 0
    %373 = vmatprep.subr.bf16.mxu0 0
    %374 = vmatpush1.bf16.msra.mxu0 0
    %375 = vmatprep.subr.bf16.mxu0 0
    %376 = vmatpush1.bf16.msra.mxu0 0
    %377 = vmatprep.subr.bf16.mxu0 0
    %378 = vmatpush1.bf16.msra.mxu0 0
    %379 = vmatprep.subr.bf16.mxu0 0
    %380 = vmatpush1.bf16.msra.mxu0 0
    %381 = vmatprep.subr.bf16.mxu0 0
    %382 = vmatpush1.bf16.msra.mxu0 0
    %383 = vmatprep.subr.bf16.mxu0 0
    %384 = vmatpush1.bf16.msra.mxu0 0
    %385 = vmatprep.subr.bf16.mxu0 0
    %386 = vmatpush1.bf16.msra.mxu0 0
    %387 = vmatprep.subr.bf16.mxu0 0
    %388 = vmatpush1.bf16.msra.mxu0 0
    %389 = vmatprep.subr.bf16.mxu0 0
    %390 = vmatpush1.bf16.msra.mxu0 0
    %391 = vmatprep.subr.bf16.mxu0 0
    %392 = vmatpush1.bf16.msra.mxu0 0
    %393 = vmatprep.subr.bf16.mxu0 0
    %394 = vmatpush1.bf16.msra.mxu0 0
    %395 = vmatprep.subr.bf16.mxu0 0
    %396 = vmatpush1.bf16.msra.mxu0 0
    %397 = vmatprep.mubr.bf16.mxu0 0
    %398 = vmatmul.mubr.bf16.gmra.mrb[0].mxu0 %v195
    %v399 = vpop.f32.mrb[0].mxu0
    %v400 = vadd.f32 0.0, %v399
    %v401 = vpop.f32.mrb[0].mxu0
    %v402 = vpop.f32.mrb[0].mxu0
    %v403 = vadd.f32 0.0, %v402
    %v404 = vpop.f32.mrb[0].mxu0
    %405 = vdwg.mxu0
    %v406 = vpack.c.bf16 %v362, %v359
    %v407 = vpack.c.bf16 %v403, %v400
    %410 = vrot.lane.b32.xlu0 %v322, 32
    %v411 = vpop.permute.xlu0 %410
    %412 = vrot.lane.b32.xlu0 %v323, 32
    %v413 = vpop.permute.xlu0 %412
    %vm414 = vcmask 261120
    %v417 = vsel %vm414, %v406, %v411
    %v420 = vsel %vm414, %v407, %v413
    %v421 = vlaneseq
    %v422 = vshrl.u32 %v421, 7
    %v423 = vsub.s32 1, %v422
    %v424 = vrot.slane %v137, %v423
    %v433 = vunpack.c.l.b16 %v121
    %v434 = vunpack.c.l.b16 %v122
    %v435 = vunpack.c.l.b16 %v123
    %v436 = vunpack.c.l.b16 %v124
    %v437 = vunpack.c.l.b16 %v125
    %v438 = vunpack.c.l.b16 %v126
    %v439 = vunpack.c.l.b16 %v127
    %v440 = vunpack.c.l.b16 %v128
    %v441 = vpack.c.b16 %v434, %v433
    %v442 = vpack.c.b16 %v436, %v435
    %v443 = vpack.c.b16 %v438, %v437
    %v444 = vpack.c.b16 %v440, %v439
    %vm449 = vcmask 523264
    %v450 = vsel %vm449, %v417, 0
    %v452 = vsel %vm449, %v420, 0
    %454 = vmatprep.subr.bf16.mxu0 0
    %455 = vmatpush1.bf16.msra.mxu0 %v441
    %456 = vmatprep.subr.bf16.mxu0 0
    %457 = vmatpush1.bf16.msra.mxu0 %v442
    %458 = vmatprep.subr.bf16.mxu0 0
    %459 = vmatpush1.bf16.msra.mxu0 %v443
    %460 = vmatprep.subr.bf16.mxu0 0
    %461 = vmatpush1.bf16.msra.mxu0 %v444
    %462 = vmatprep.subr.bf16.mxu0 0
    %463 = vmatpush1.bf16.msra.mxu0 0
    %464 = vmatprep.subr.bf16.mxu0 0
    %465 = vmatpush1.bf16.msra.mxu0 0
    %466 = vmatprep.subr.bf16.mxu0 0
    %467 = vmatpush1.bf16.msra.mxu0 0
    %468 = vmatprep.subr.bf16.mxu0 0
    %469 = vmatpush1.bf16.msra.mxu0 0
    %470 = vmatprep.subr.bf16.mxu0 0
    %471 = vmatpush1.bf16.msra.mxu0 0
    %472 = vmatprep.subr.bf16.mxu0 0
    %473 = vmatpush1.bf16.msra.mxu0 0
    %474 = vmatprep.subr.bf16.mxu0 0
    %475 = vmatpush1.bf16.msra.mxu0 0
    %476 = vmatprep.subr.bf16.mxu0 0
    %477 = vmatpush1.bf16.msra.mxu0 0
    %478 = vmatprep.subr.bf16.mxu0 0
    %479 = vmatpush1.bf16.msra.mxu0 0
    %480 = vmatprep.subr.bf16.mxu0 0
    %481 = vmatpush1.bf16.msra.mxu0 0
    %482 = vmatprep.subr.bf16.mxu0 0
    %483 = vmatpush1.bf16.msra.mxu0 0
    %484 = vmatprep.subr.bf16.mxu0 0
    %485 = vmatpush1.bf16.msra.mxu0 0
    %486 = vmatprep.mubr.bf16.mxu0 0
    %487 = vmatmul.mubr.bf16.gmra.mrb[0].mxu0 %v450
    %v488 = vpop.f32.mrb[0].mxu0
    %v489 = vadd.f32 %v424, %v488
    %v490 = vpop.f32.mrb[0].mxu0
    %v491 = vpop.f32.mrb[0].mxu0
    %v492 = vadd.f32 %v424, %v491
    %v493 = vpop.f32.mrb[0].mxu0
    %494 = vmatprep.mubr.bf16.mxu0 0
    %495 = vmatmul.mubr.bf16.gmra.mrb[0].mxu0 %v452
    %v496 = vpop.f32.mrb[0].mxu0
    %v497 = vadd.f32 %v424, %v496
    %v498 = vpop.f32.mrb[0].mxu0
    %v499 = vpop.f32.mrb[0].mxu0
    %v500 = vadd.f32 %v424, %v499
    %v501 = vpop.f32.mrb[0].mxu0
    %502 = vdwg.mxu0
    %v503 = vmul.f32 %v489, %v102
    %v504 = vmul.f32 %v492, %v107
    %v505 = vmul.f32 %v497, %v112
    %v506 = vmul.f32 %v500, %v117
    %v507 = vmax.f32 %v503, 0.0
    %v508 = vmax.f32 %v504, 0.0
    %v509 = vmax.f32 %v505, 0.0
    %v510 = vmax.f32 %v506, 0.0
    %v511 = vpack.c.bf16 %v508, %v507
    %v512 = vpack.c.bf16 %v510, %v509
    %515 = vrot.lane.b32.xlu0 %v511, 32
    %v516 = vpop.permute.xlu0 %515
    %517 = vrot.lane.b32.xlu0 %v512, 32
    %v518 = vpop.permute.xlu0 %517
    %v521 = vsel %vm414, %v322, %v516
    %v524 = vsel %vm414, %v323, %v518
    %v525 = vlaneseq
    %v526 = vshrl.u32 %v525, 7
    %v527 = vsub.s32 2, %v526
    %v528 = vrot.slane %v137, %v527
    %v537 = vunpack.c.l.b16 %v129
    %v538 = vunpack.c.l.b16 %v130
    %v539 = vunpack.c.l.b16 %v131
    %v540 = vunpack.c.l.b16 %v132
    %v541 = vunpack.c.l.b16 %v133
    %v542 = vunpack.c.l.b16 %v134
    %v543 = vunpack.c.l.b16 %v135
    %v544 = vunpack.c.l.b16 %v136
    %v545 = vpack.c.b16 %v538, %v537
    %v546 = vpack.c.b16 %v540, %v539
    %v547 = vpack.c.b16 %v542, %v541
    %v548 = vpack.c.b16 %v544, %v543
    %v553 = vsel %vm449, %v521, 0
    %v555 = vsel %vm449, %v524, 0
    %557 = vmatprep.subr.bf16.mxu0 0
    %558 = vmatpush1.bf16.msra.mxu0 %v545
    %559 = vmatprep.subr.bf16.mxu0 0
    %560 = vmatpush1.bf16.msra.mxu0 %v546
    %561 = vmatprep.subr.bf16.mxu0 0
    %562 = vmatpush1.bf16.msra.mxu0 %v547
    %563 = vmatprep.subr.bf16.mxu0 0
    %564 = vmatpush1.bf16.msra.mxu0 %v548
    %565 = vmatprep.subr.bf16.mxu0 0
    %566 = vmatpush1.bf16.msra.mxu0 0
    %567 = vmatprep.subr.bf16.mxu0 0
    %568 = vmatpush1.bf16.msra.mxu0 0
    %569 = vmatprep.subr.bf16.mxu0 0
    %570 = vmatpush1.bf16.msra.mxu0 0
    %571 = vmatprep.subr.bf16.mxu0 0
    %572 = vmatpush1.bf16.msra.mxu0 0
    %573 = vmatprep.subr.bf16.mxu0 0
    %574 = vmatpush1.bf16.msra.mxu0 0
    %575 = vmatprep.subr.bf16.mxu0 0
    %576 = vmatpush1.bf16.msra.mxu0 0
    %577 = vmatprep.subr.bf16.mxu0 0
    %578 = vmatpush1.bf16.msra.mxu0 0
    %579 = vmatprep.subr.bf16.mxu0 0
    %580 = vmatpush1.bf16.msra.mxu0 0
    %581 = vmatprep.subr.bf16.mxu0 0
    %582 = vmatpush1.bf16.msra.mxu0 0
    %583 = vmatprep.subr.bf16.mxu0 0
    %584 = vmatpush1.bf16.msra.mxu0 0
    %585 = vmatprep.subr.bf16.mxu0 0
    %586 = vmatpush1.bf16.msra.mxu0 0
    %587 = vmatprep.subr.bf16.mxu0 0
    %588 = vmatpush1.bf16.msra.mxu0 0
    %589 = vmatprep.mubr.bf16.mxu0 0
    %590 = vmatmul.mubr.bf16.gmra.mrb[0].mxu0 %v553
    %v591 = vpop.f32.mrb[0].mxu0
    %v592 = vadd.f32 %v528, %v591
    %v593 = vpop.f32.mrb[0].mxu0
    %v594 = vpop.f32.mrb[0].mxu0
    %v595 = vadd.f32 %v528, %v594
    %v596 = vpop.f32.mrb[0].mxu0
    %597 = vmatprep.mubr.bf16.mxu0 0
    %598 = vmatmul.mubr.bf16.gmra.mrb[0].mxu0 %v555
    %v599 = vpop.f32.mrb[0].mxu0
    %v600 = vadd.f32 %v528, %v599
    %v601 = vpop.f32.mrb[0].mxu0
    %v602 = vpop.f32.mrb[0].mxu0
    %v603 = vadd.f32 %v528, %v602
    %v604 = vpop.f32.mrb[0].mxu0
    %605 = vdwg.mxu0
    %v606 = vmax.f32 %v592, 0.0
    %v607 = vmax.f32 %v595, 0.0
    %v608 = vmax.f32 %v600, 0.0
    %v609 = vmax.f32 %v603, 0.0
    %v610 = vmul.f32 %v606, %v102
    %v611 = vmul.f32 %v607, %v107
    %v612 = vmul.f32 %v608, %v112
    %v613 = vmul.f32 %v609, %v117
    %v614 = vpack.c.bf16 %v611, %v610
    %v615 = vpack.c.bf16 %v613, %v612
    %v616 = vld [vmem:[%s7] sm:$0xf]
    %v617 = vld [vmem:[%s7 + $0x4] sm:$0xf]
    %v618 = vld [vmem:[%s7 + $0x8] sm:$0xf]
    %v619 = vld [vmem:[%s7 + $0xc] sm:$0xf]
    %v620 = vld [vmem:[%s7 + $0x10] sm:$0xf]
    %v621 = vld [vmem:[%s7 + $0x14] sm:$0xf]
    %v622 = vld [vmem:[%s7 + $0x18] sm:$0xf]
    %v623 = vld [vmem:[%s7 + $0x1c] sm:$0xf]
    %v624 = vld [vmem:[%s8] sm:$0xf]
    %v625 = vld [vmem:[%s8 + $0x4] sm:$0xf]
    %v626 = vld [vmem:[%s8 + $0x8] sm:$0xf]
    %v627 = vld [vmem:[%s8 + $0xc] sm:$0xf]
    %v628 = vld [vmem:[%s8 + $0x10] sm:$0xf]
    %v629 = vld [vmem:[%s8 + $0x14] sm:$0xf]
    %v630 = vld [vmem:[%s8 + $0x18] sm:$0xf]
    %v631 = vld [vmem:[%s8 + $0x1c] sm:$0xf]
    %v632 = vld [vmem:[%s9] sm:$0xf]
    %v633 = vld [vmem:[%s9 + $0x4] sm:$0xf]
    %v634 = vld [vmem:[%s9 + $0x8] sm:$0xf]
    %v635 = vld [vmem:[%s9 + $0xc] sm:$0xf]
    %v636 = vld [vmem:[%s9 + $0x10] sm:$0xf]
    %v637 = vld [vmem:[%s9 + $0x14] sm:$0xf]
    %v638 = vld [vmem:[%s9 + $0x18] sm:$0xf]
    %v639 = vld [vmem:[%s9 + $0x1c] sm:$0xf]
    %v640 = vld [vmem:[%s10] sm:$0x7]
    %641 = vmatprep.subr.bf16.mxu0 0
    %642 = vmatpush1.bf16.msra.mxu0 %v614
    %643 = vmatprep.subr.bf16.mxu0 0
    %644 = vmatpush1.bf16.msra.mxu0 0
    %645 = vmatprep.subr.bf16.mxu0 0
    %646 = vmatpush1.bf16.msra.mxu0 0
    %647 = vmatprep.subr.bf16.mxu0 0
    %648 = vmatpush1.bf16.msra.mxu0 0
    %649 = vmatprep.subr.bf16.mxu0 0
    %650 = vmatpush1.bf16.msra.mxu0 0
    %651 = vmatprep.subr.bf16.mxu0 0
    %652 = vmatpush1.bf16.msra.mxu0 0
    %653 = vmatprep.subr.bf16.mxu0 0
    %654 = vmatpush1.bf16.msra.mxu0 0
    %655 = vmatprep.subr.bf16.mxu0 0
    %656 = vmatpush1.bf16.msra.mxu0 0
    %657 = vmatprep.subr.bf16.mxu0 0
    %658 = vmatpush1.bf16.msra.mxu0 0
    %659 = vmatprep.subr.bf16.mxu0 0
    %660 = vmatpush1.bf16.msra.mxu0 0
    %661 = vmatprep.subr.bf16.mxu0 0
    %662 = vmatpush1.bf16.msra.mxu0 0
    %663 = vmatprep.subr.bf16.mxu0 0
    %664 = vmatpush1.bf16.msra.mxu0 0
    %665 = vmatprep.subr.bf16.mxu0 0
    %666 = vmatpush1.bf16.msra.mxu0 0
    %667 = vmatprep.subr.bf16.mxu0 0
    %668 = vmatpush1.bf16.msra.mxu0 0
    %669 = vmatprep.subr.bf16.mxu0 0
    %670 = vmatpush1.bf16.msra.mxu0 0
    %671 = vmatprep.subr.bf16.mxu0 0
    %672 = vmatpush1.bf16.msra.mxu0 0
    %673 = vmatprep.mubr.bf16.mxu0 0
    %674 = vmatmul.mubr.bf16.gmra.mrb[0].mxu0 %v145
    %v675 = vpop.f32.mrb[0].mxu0
    %v676 = vadd.f32 0.0, %v675
    %v677 = vpop.f32.mrb[0].mxu0
    %v678 = vpop.f32.mrb[0].mxu0
    %v679 = vadd.f32 0.0, %v678
    %v680 = vpop.f32.mrb[0].mxu0
    %681 = vdwg.mxu0
    %682 = vmatprep.subr.bf16.mxu0 0
    %683 = vmatpush1.bf16.msra.mxu0 %v615
    %684 = vmatprep.subr.bf16.mxu0 0
    %685 = vmatpush1.bf16.msra.mxu0 0
    %686 = vmatprep.subr.bf16.mxu0 0
    %687 = vmatpush1.bf16.msra.mxu0 0
    %688 = vmatprep.subr.bf16.mxu0 0
    %689 = vmatpush1.bf16.msra.mxu0 0
    %690 = vmatprep.subr.bf16.mxu0 0
    %691 = vmatpush1.bf16.msra.mxu0 0
    %692 = vmatprep.subr.bf16.mxu0 0
    %693 = vmatpush1.bf16.msra.mxu0 0
    %694 = vmatprep.subr.bf16.mxu0 0
    %695 = vmatpush1.bf16.msra.mxu0 0
    %696 = vmatprep.subr.bf16.mxu0 0
    %697 = vmatpush1.bf16.msra.mxu0 0
    %698 = vmatprep.subr.bf16.mxu0 0
    %699 = vmatpush1.bf16.msra.mxu0 0
    %700 = vmatprep.subr.bf16.mxu0 0
    %701 = vmatpush1.bf16.msra.mxu0 0
    %702 = vmatprep.subr.bf16.mxu0 0
    %703 = vmatpush1.bf16.msra.mxu0 0
    %704 = vmatprep.subr.bf16.mxu0 0
    %705 = vmatpush1.bf16.msra.mxu0 0
    %706 = vmatprep.subr.bf16.mxu0 0
    %707 = vmatpush1.bf16.msra.mxu0 0
    %708 = vmatprep.subr.bf16.mxu0 0
    %709 = vmatpush1.bf16.msra.mxu0 0
    %710 = vmatprep.subr.bf16.mxu0 0
    %711 = vmatpush1.bf16.msra.mxu0 0
    %712 = vmatprep.subr.bf16.mxu0 0
    %713 = vmatpush1.bf16.msra.mxu0 0
    %714 = vmatprep.mubr.bf16.mxu0 0
    %715 = vmatmul.mubr.bf16.gmra.mrb[0].mxu0 %v195
    %v716 = vpop.f32.mrb[0].mxu0
    %v717 = vadd.f32 0.0, %v716
    %v718 = vpop.f32.mrb[0].mxu0
    %v719 = vpop.f32.mrb[0].mxu0
    %v720 = vadd.f32 0.0, %v719
    %v721 = vpop.f32.mrb[0].mxu0
    %722 = vdwg.mxu0
    %v723 = vpack.c.bf16 %v679, %v676
    %v724 = vpack.c.bf16 %v720, %v717
    %727 = vrot.lane.b32.xlu0 %v614, 32
    %v728 = vpop.permute.xlu0 %727
    %729 = vrot.lane.b32.xlu0 %v615, 32
    %v730 = vpop.permute.xlu0 %729
    %v733 = vsel %vm414, %v723, %v728
    %v736 = vsel %vm414, %v724, %v730
    %v737 = vlaneseq
    %v738 = vshrl.u32 %v737, 7
    %v739 = vsub.s32 0, %v738
    %v740 = vrot.slane %v640, %v739
    %v749 = vunpack.c.l.b16 %v616
    %v750 = vunpack.c.l.b16 %v617
    %v751 = vunpack.c.l.b16 %v618
    %v752 = vunpack.c.l.b16 %v619
    %v753 = vunpack.c.l.b16 %v620
    %v754 = vunpack.c.l.b16 %v621
    %v755 = vunpack.c.l.b16 %v622
    %v756 = vunpack.c.l.b16 %v623
    %v757 = vpack.c.b16 %v750, %v749
    %v758 = vpack.c.b16 %v752, %v751
    %v759 = vpack.c.b16 %v754, %v753
    %v760 = vpack.c.b16 %v756, %v755
    %v765 = vsel %vm449, %v733, 0
    %v767 = vsel %vm449, %v736, 0
    %769 = vmatprep.subr.bf16.mxu0 0
    %770 = vmatpush1.bf16.msra.mxu0 %v757
    %771 = vmatprep.subr.bf16.mxu0 0
    %772 = vmatpush1.bf16.msra.mxu0 %v758
    %773 = vmatprep.subr.bf16.mxu0 0
    %774 = vmatpush1.bf16.msra.mxu0 %v759
    %775 = vmatprep.subr.bf16.mxu0 0
    %776 = vmatpush1.bf16.msra.mxu0 %v760
    %777 = vmatprep.subr.bf16.mxu0 0
    %778 = vmatpush1.bf16.msra.mxu0 0
    %779 = vmatprep.subr.bf16.mxu0 0
    %780 = vmatpush1.bf16.msra.mxu0 0
    %781 = vmatprep.subr.bf16.mxu0 0
    %782 = vmatpush1.bf16.msra.mxu0 0
    %783 = vmatprep.subr.bf16.mxu0 0
    %784 = vmatpush1.bf16.msra.mxu0 0
    %785 = vmatprep.subr.bf16.mxu0 0
    %786 = vmatpush1.bf16.msra.mxu0 0
    %787 = vmatprep.subr.bf16.mxu0 0
    %788 = vmatpush1.bf16.msra.mxu0 0
    %789 = vmatprep.subr.bf16.mxu0 0
    %790 = vmatpush1.bf16.msra.mxu0 0
    %791 = vmatprep.subr.bf16.mxu0 0
    %792 = vmatpush1.bf16.msra.mxu0 0
    %793 = vmatprep.subr.bf16.mxu0 0
    %794 = vmatpush1.bf16.msra.mxu0 0
    %795 = vmatprep.subr.bf16.mxu0 0
    %796 = vmatpush1.bf16.msra.mxu0 0
    %797 = vmatprep.subr.bf16.mxu0 0
    %798 = vmatpush1.bf16.msra.mxu0 0
    %799 = vmatprep.subr.bf16.mxu0 0
    %800 = vmatpush1.bf16.msra.mxu0 0
    %801 = vmatprep.mubr.bf16.mxu0 0
    %802 = vmatmul.mubr.bf16.gmra.mrb[0].mxu0 %v765
    %v803 = vpop.f32.mrb[0].mxu0
    %v804 = vadd.f32 %v740, %v803
    %v805 = vpop.f32.mrb[0].mxu0
    %v806 = vpop.f32.mrb[0].mxu0
    %v807 = vadd.f32 %v740, %v806
    %v808 = vpop.f32.mrb[0].mxu0
    %809 = vmatprep.mubr.bf16.mxu0 0
    %810 = vmatmul.mubr.bf16.gmra.mrb[0].mxu0 %v767
    %v811 = vpop.f32.mrb[0].mxu0
    %v812 = vadd.f32 %v740, %v811
    %v813 = vpop.f32.mrb[0].mxu0
    %v814 = vpop.f32.mrb[0].mxu0
    %v815 = vadd.f32 %v740, %v814
    %v816 = vpop.f32.mrb[0].mxu0
    %817 = vdwg.mxu0
    %v818 = vmul.f32 %v804, %v102
    %v819 = vmul.f32 %v807, %v107
    %v820 = vmul.f32 %v812, %v112
    %v821 = vmul.f32 %v815, %v117
    %v822 = vmax.f32 %v818, 0.0
    %v823 = vmax.f32 %v819, 0.0
    %v824 = vmax.f32 %v820, 0.0
    %v825 = vmax.f32 %v821, 0.0
    %v826 = vpack.c.bf16 %v823, %v822
    %v827 = vpack.c.bf16 %v825, %v824
    %828 = vmatprep.subr.bf16.mxu0 0
    %829 = vmatpush1.bf16.msra.mxu0 %v826
    %830 = vmatprep.subr.bf16.mxu0 0
    %831 = vmatpush1.bf16.msra.mxu0 0
    %832 = vmatprep.subr.bf16.mxu0 0
    %833 = vmatpush1.bf16.msra.mxu0 0
    %834 = vmatprep.subr.bf16.mxu0 0
    %835 = vmatpush1.bf16.msra.mxu0 0
    %836 = vmatprep.subr.bf16.mxu0 0
    %837 = vmatpush1.bf16.msra.mxu0 0
    %838 = vmatprep.subr.bf16.mxu0 0
    %839 = vmatpush1.bf16.msra.mxu0 0
    %840 = vmatprep.subr.bf16.mxu0 0
    %841 = vmatpush1.bf16.msra.mxu0 0
    %842 = vmatprep.subr.bf16.mxu0 0
    %843 = vmatpush1.bf16.msra.mxu0 0
    %844 = vmatprep.subr.bf16.mxu0 0
    %845 = vmatpush1.bf16.msra.mxu0 0
    %846 = vmatprep.subr.bf16.mxu0 0
    %847 = vmatpush1.bf16.msra.mxu0 0
    %848 = vmatprep.subr.bf16.mxu0 0
    %849 = vmatpush1.bf16.msra.mxu0 0
    %850 = vmatprep.subr.bf16.mxu0 0
    %851 = vmatpush1.bf16.msra.mxu0 0
    %852 = vmatprep.subr.bf16.mxu0 0
    %853 = vmatpush1.bf16.msra.mxu0 0
    %854 = vmatprep.subr.bf16.mxu0 0
    %855 = vmatpush1.bf16.msra.mxu0 0
    %856 = vmatprep.subr.bf16.mxu0 0
    %857 = vmatpush1.bf16.msra.mxu0 0
    %858 = vmatprep.subr.bf16.mxu0 0
    %859 = vmatpush1.bf16.msra.mxu0 0
    %860 = vmatprep.mubr.bf16.mxu0 0
    %861 = vmatmul.mubr.bf16.gmra.mrb[0].mxu0 %v145
    %v862 = vpop.f32.mrb[0].mxu0
    %v863 = vadd.f32 0.0, %v862
    %v864 = vpop.f32.mrb[0].mxu0
    %v865 = vpop.f32.mrb[0].mxu0
    %v866 = vadd.f32 0.0, %v865
    %v867 = vpop.f32.mrb[0].mxu0
    %868 = vdwg.mxu0
    %869 = vmatprep.subr.bf16.mxu0 0
    %870 = vmatpush1.bf16.msra.mxu0 %v827
    %871 = vmatprep.subr.bf16.mxu0 0
    %872 = vmatpush1.bf16.msra.mxu0 0
    %873 = vmatprep.subr.bf16.mxu0 0
    %874 = vmatpush1.bf16.msra.mxu0 0
    %875 = vmatprep.subr.bf16.mxu0 0
    %876 = vmatpush1.bf16.msra.mxu0 0
    %877 = vmatprep.subr.bf16.mxu0 0
    %878 = vmatpush1.bf16.msra.mxu0 0
    %879 = vmatprep.subr.bf16.mxu0 0
    %880 = vmatpush1.bf16.msra.mxu0 0
    %881 = vmatprep.subr.bf16.mxu0 0
    %882 = vmatpush1.bf16.msra.mxu0 0
    %883 = vmatprep.subr.bf16.mxu0 0
    %884 = vmatpush1.bf16.msra.mxu0 0
    %885 = vmatprep.subr.bf16.mxu0 0
    %886 = vmatpush1.bf16.msra.mxu0 0
    %887 = vmatprep.subr.bf16.mxu0 0
    %888 = vmatpush1.bf16.msra.mxu0 0
    %889 = vmatprep.subr.bf16.mxu0 0
    %890 = vmatpush1.bf16.msra.mxu0 0
    %891 = vmatprep.subr.bf16.mxu0 0
    %892 = vmatpush1.bf16.msra.mxu0 0
    %893 = vmatprep.subr.bf16.mxu0 0
    %894 = vmatpush1.bf16.msra.mxu0 0
    %895 = vmatprep.subr.bf16.mxu0 0
    %896 = vmatpush1.bf16.msra.mxu0 0
    %897 = vmatprep.subr.bf16.mxu0 0
    %898 = vmatpush1.bf16.msra.mxu0 0
    %899 = vmatprep.subr.bf16.mxu0 0
    %900 = vmatpush1.bf16.msra.mxu0 0
    %901 = vmatprep.mubr.bf16.mxu0 0
    %902 = vmatmul.mubr.bf16.gmra.mrb[0].mxu0 %v195
    %v903 = vpop.f32.mrb[0].mxu0
    %v904 = vadd.f32 0.0, %v903
    %v905 = vpop.f32.mrb[0].mxu0
    %v906 = vpop.f32.mrb[0].mxu0
    %v907 = vadd.f32 0.0, %v906
    %v908 = vpop.f32.mrb[0].mxu0
    %909 = vdwg.mxu0
    %v910 = vpack.c.bf16 %v866, %v863
    %v911 = vpack.c.bf16 %v907, %v904
    %914 = vrot.lane.b32.xlu0 %v826, 32
    %v915 = vpop.permute.xlu0 %914
    %916 = vrot.lane.b32.xlu0 %v827, 32
    %v917 = vpop.permute.xlu0 %916
    %v920 = vsel %vm414, %v910, %v915
    %v923 = vsel %vm414, %v911, %v917
    %v924 = vlaneseq
    %v925 = vshrl.u32 %v924, 7
    %v926 = vsub.s32 1, %v925
    %v927 = vrot.slane %v640, %v926
    %v936 = vunpack.c.l.b16 %v624
    %v937 = vunpack.c.l.b16 %v625
    %v938 = vunpack.c.l.b16 %v626
    %v939 = vunpack.c.l.b16 %v627
    %v940 = vunpack.c.l.b16 %v628
    %v941 = vunpack.c.l.b16 %v629
    %v942 = vunpack.c.l.b16 %v630
    %v943 = vunpack.c.l.b16 %v631
    %v944 = vpack.c.b16 %v937, %v936
    %v945 = vpack.c.b16 %v939, %v938
    %v946 = vpack.c.b16 %v941, %v940
    %v947 = vpack.c.b16 %v943, %v942
    %v952 = vsel %vm449, %v920, 0
    %v954 = vsel %vm449, %v923, 0
    %956 = vmatprep.subr.bf16.mxu0 0
    %957 = vmatpush1.bf16.msra.mxu0 %v944
    %958 = vmatprep.subr.bf16.mxu0 0
    %959 = vmatpush1.bf16.msra.mxu0 %v945
    %960 = vmatprep.subr.bf16.mxu0 0
    %961 = vmatpush1.bf16.msra.mxu0 %v946
    %962 = vmatprep.subr.bf16.mxu0 0
    %963 = vmatpush1.bf16.msra.mxu0 %v947
    %964 = vmatprep.subr.bf16.mxu0 0
    %965 = vmatpush1.bf16.msra.mxu0 0
    %966 = vmatprep.subr.bf16.mxu0 0
    %967 = vmatpush1.bf16.msra.mxu0 0
    %968 = vmatprep.subr.bf16.mxu0 0
    %969 = vmatpush1.bf16.msra.mxu0 0
    %970 = vmatprep.subr.bf16.mxu0 0
    %971 = vmatpush1.bf16.msra.mxu0 0
    %972 = vmatprep.subr.bf16.mxu0 0
    %973 = vmatpush1.bf16.msra.mxu0 0
    %974 = vmatprep.subr.bf16.mxu0 0
    %975 = vmatpush1.bf16.msra.mxu0 0
    %976 = vmatprep.subr.bf16.mxu0 0
    %977 = vmatpush1.bf16.msra.mxu0 0
    %978 = vmatprep.subr.bf16.mxu0 0
    %979 = vmatpush1.bf16.msra.mxu0 0
    %980 = vmatprep.subr.bf16.mxu0 0
    %981 = vmatpush1.bf16.msra.mxu0 0
    %982 = vmatprep.subr.bf16.mxu0 0
    %983 = vmatpush1.bf16.msra.mxu0 0
    %984 = vmatprep.subr.bf16.mxu0 0
    %985 = vmatpush1.bf16.msra.mxu0 0
    %986 = vmatprep.subr.bf16.mxu0 0
    %987 = vmatpush1.bf16.msra.mxu0 0
    %988 = vmatprep.mubr.bf16.mxu0 0
    %989 = vmatmul.mubr.bf16.gmra.mrb[0].mxu0 %v952
    %v990 = vpop.f32.mrb[0].mxu0
    %v991 = vadd.f32 %v927, %v990
    %v992 = vpop.f32.mrb[0].mxu0
    %v993 = vpop.f32.mrb[0].mxu0
    %v994 = vadd.f32 %v927, %v993
    %v995 = vpop.f32.mrb[0].mxu0
    %996 = vmatprep.mubr.bf16.mxu0 0
    %997 = vmatmul.mubr.bf16.gmra.mrb[0].mxu0 %v954
    %v998 = vpop.f32.mrb[0].mxu0
    %v999 = vadd.f32 %v927, %v998
    %v1000 = vpop.f32.mrb[0].mxu0
    %v1001 = vpop.f32.mrb[0].mxu0
    %v1002 = vadd.f32 %v927, %v1001
    %v1003 = vpop.f32.mrb[0].mxu0
    %1004 = vdwg.mxu0
    %v1005 = vmul.f32 %v991, %v102
    %v1006 = vmul.f32 %v994, %v107
    %v1007 = vmul.f32 %v999, %v112
    %v1008 = vmul.f32 %v1002, %v117
    %v1009 = vmax.f32 %v1005, 0.0
    %v1010 = vmax.f32 %v1006, 0.0
    %v1011 = vmax.f32 %v1007, 0.0
    %v1012 = vmax.f32 %v1008, 0.0
    %v1013 = vpack.c.bf16 %v1010, %v1009
    %v1014 = vpack.c.bf16 %v1012, %v1011
    %1017 = vrot.lane.b32.xlu0 %v1013, 32
    %v1018 = vpop.permute.xlu0 %1017
    %1019 = vrot.lane.b32.xlu0 %v1014, 32
    %v1020 = vpop.permute.xlu0 %1019
    %v1023 = vsel %vm414, %v826, %v1018
    %v1026 = vsel %vm414, %v827, %v1020
    %v1027 = vlaneseq
    %v1028 = vshrl.u32 %v1027, 7
    %v1029 = vsub.s32 2, %v1028
    %v1030 = vrot.slane %v640, %v1029
    %v1039 = vunpack.c.l.b16 %v632
    %v1040 = vunpack.c.l.b16 %v633
    %v1041 = vunpack.c.l.b16 %v634
    %v1042 = vunpack.c.l.b16 %v635
    %v1043 = vunpack.c.l.b16 %v636
    %v1044 = vunpack.c.l.b16 %v637
    %v1045 = vunpack.c.l.b16 %v638
    %v1046 = vunpack.c.l.b16 %v639
    %v1047 = vpack.c.b16 %v1040, %v1039
    %v1048 = vpack.c.b16 %v1042, %v1041
    %v1049 = vpack.c.b16 %v1044, %v1043
    %v1050 = vpack.c.b16 %v1046, %v1045
    %v1055 = vsel %vm449, %v1023, 0
    %v1057 = vsel %vm449, %v1026, 0
    %1059 = vmatprep.subr.bf16.mxu0 0
    %1060 = vmatpush1.bf16.msra.mxu0 %v1047
    %1061 = vmatprep.subr.bf16.mxu0 0
    %1062 = vmatpush1.bf16.msra.mxu0 %v1048
    %1063 = vmatprep.subr.bf16.mxu0 0
    %1064 = vmatpush1.bf16.msra.mxu0 %v1049
    %1065 = vmatprep.subr.bf16.mxu0 0
    %1066 = vmatpush1.bf16.msra.mxu0 %v1050
    %1067 = vmatprep.subr.bf16.mxu0 0
    %1068 = vmatpush1.bf16.msra.mxu0 0
    %1069 = vmatprep.subr.bf16.mxu0 0
    %1070 = vmatpush1.bf16.msra.mxu0 0
    %1071 = vmatprep.subr.bf16.mxu0 0
    %1072 = vmatpush1.bf16.msra.mxu0 0
    %1073 = vmatprep.subr.bf16.mxu0 0
    %1074 = vmatpush1.bf16.msra.mxu0 0
    %1075 = vmatprep.subr.bf16.mxu0 0
    %1076 = vmatpush1.bf16.msra.mxu0 0
    %1077 = vmatprep.subr.bf16.mxu0 0
    %1078 = vmatpush1.bf16.msra.mxu0 0
    %1079 = vmatprep.subr.bf16.mxu0 0
    %1080 = vmatpush1.bf16.msra.mxu0 0
    %1081 = vmatprep.subr.bf16.mxu0 0
    %1082 = vmatpush1.bf16.msra.mxu0 0
    %1083 = vmatprep.subr.bf16.mxu0 0
    %1084 = vmatpush1.bf16.msra.mxu0 0
    %1085 = vmatprep.subr.bf16.mxu0 0
    %1086 = vmatpush1.bf16.msra.mxu0 0
    %1087 = vmatprep.subr.bf16.mxu0 0
    %1088 = vmatpush1.bf16.msra.mxu0 0
    %1089 = vmatprep.subr.bf16.mxu0 0
    %1090 = vmatpush1.bf16.msra.mxu0 0
    %1091 = vmatprep.mubr.bf16.mxu0 0
    %1092 = vmatmul.mubr.bf16.gmra.mrb[0].mxu0 %v1055
    %v1093 = vpop.f32.mrb[0].mxu0
    %v1094 = vadd.f32 %v1030, %v1093
    %v1095 = vpop.f32.mrb[0].mxu0
    %v1096 = vpop.f32.mrb[0].mxu0
    %v1097 = vadd.f32 %v1030, %v1096
    %v1098 = vpop.f32.mrb[0].mxu0
    %1099 = vmatprep.mubr.bf16.mxu0 0
    %1100 = vmatmul.mubr.bf16.gmra.mrb[0].mxu0 %v1057
    %v1101 = vpop.f32.mrb[0].mxu0
    %v1102 = vadd.f32 %v1030, %v1101
    %v1103 = vpop.f32.mrb[0].mxu0
    %v1104 = vpop.f32.mrb[0].mxu0
    %v1105 = vadd.f32 %v1030, %v1104
    %v1106 = vpop.f32.mrb[0].mxu0
    %1107 = vdwg.mxu0
    %v1108 = vmax.f32 %v1094, 0.0
    %v1109 = vmax.f32 %v1097, 0.0
    %v1110 = vmax.f32 %v1102, 0.0
    %v1111 = vmax.f32 %v1105, 0.0
    %v1112 = vmul.f32 %v1108, %v102
    %v1113 = vmul.f32 %v1109, %v107
    %v1114 = vmul.f32 %v1110, %v112
    %v1115 = vmul.f32 %v1111, %v117
    %v1116 = vsel %vm414, %v610, 0.0
    %v1117 = vsel %vm414, %v611, 0.0
    %v1118 = vadd.f32 %v1116, %v1117
    %v1119 = vrot.slane %v1118, 4
    %v1120 = vadd.f32 %v1118, %v1119
    %v1121 = vrot.slane %v1120, 2
    %v1122 = vadd.f32 %v1120, %v1121
    %v1123 = vrot.slane %v1122, 1
    %v1124 = vadd.f32 %v1122, %v1123
    %v1125 = vsel %vm414, %v612, 0.0
    %v1126 = vsel %vm414, %v613, 0.0
    %v1127 = vadd.f32 %v1125, %v1126
    %v1128 = vrot.slane %v1127, 4
    %v1129 = vadd.f32 %v1127, %v1128
    %v1130 = vrot.slane %v1129, 2
    %v1131 = vadd.f32 %v1129, %v1130
    %v1132 = vrot.slane %v1131, 1
    %v1133 = vadd.f32 %v1131, %v1132
    %v1134 = vsel %vm414, %v1112, 0.0
    %v1135 = vsel %vm414, %v1113, 0.0
    %v1136 = vadd.f32 %v1134, %v1135
    %v1137 = vrot.slane %v1136, 4
    %v1138 = vadd.f32 %v1136, %v1137
    %v1139 = vrot.slane %v1138, 2
    %v1140 = vadd.f32 %v1138, %v1139
    %v1141 = vrot.slane %v1140, 1
    %v1142 = vadd.f32 %v1140, %v1141
    %v1143 = vsel %vm414, %v1114, 0.0
    %v1144 = vsel %vm414, %v1115, 0.0
    %v1145 = vadd.f32 %v1143, %v1144
    %v1146 = vrot.slane %v1145, 4
    %v1147 = vadd.f32 %v1145, %v1146
    %v1148 = vrot.slane %v1147, 2
    %v1149 = vadd.f32 %v1147, %v1148
    %v1150 = vrot.slane %v1149, 1
    %v1151 = vadd.f32 %v1149, %v1150
    %vm1154 = vcmask 1041409
    %v1155 = vsel %vm1154, %v1133, %v1124
    %v1159 = vsel %vm1154, %v1151, %v1142
    %1160 = vrot.lane.b32.xlu0 %v1159, 32
    %v1161 = vpop.permute.xlu0 %1160
    %v1163 = vsel %vm414, %v1155, %v1161
    %v1164 = vld [vmem:[%s11] sm:$0xff]
    %v1165 = vld [vmem:[%s11 + $0x8] sm:$0xff]
    %v1166 = vld [vmem:[%s11 + $0x10] sm:$0xff]
    %v1167 = vld [vmem:[%s11 + $0x18] sm:$0xff]
    %v1168 = vld [vmem:[%s11 + $0x20] sm:$0xff]
    %v1169 = vld [vmem:[%s11 + $0x28] sm:$0xff]
    %v1170 = vld [vmem:[%s11 + $0x30] sm:$0xff]
    %v1171 = vld [vmem:[%s11 + $0x38] sm:$0xff]
    %v1172 = vld [vmem:[%s12] sm:$0x1]
    %v1174 = vlaneseq
    %v1175 = vshrl.u32 %v1174, 7
    %v1176 = vsub.s32 0, %v1175
    %v1177 = vrot.slane %v1172, %v1176
    %v1180 = vsel %vm449, %v1163, 0
    %1182 = vmatprep.subr.mxu0 0.0
    %1183 = vmatpush1.msra.mxu0 %v1164
    %1184 = vmatprep.subr.mxu0 0.0
    %1185 = vmatpush1.msra.mxu0 %v1165
    %1186 = vmatprep.subr.mxu0 0.0
    %1187 = vmatpush1.msra.mxu0 %v1166
    %1188 = vmatprep.subr.mxu0 0.0
    %1189 = vmatpush1.msra.mxu0 %v1167
    %1190 = vmatprep.subr.mxu0 0.0
    %1191 = vmatpush1.msra.mxu0 %v1168
    %1192 = vmatprep.subr.mxu0 0.0
    %1193 = vmatpush1.msra.mxu0 %v1169
    %1194 = vmatprep.subr.mxu0 0.0
    %1195 = vmatpush1.msra.mxu0 %v1170
    %1196 = vmatprep.subr.mxu0 0.0
    %1197 = vmatpush1.msra.mxu0 %v1171
    %1198 = vmatprep.subr.mxu0 0.0
    %1199 = vmatpush1.msra.mxu0 0.0
    %1200 = vmatprep.subr.mxu0 0.0
    %1201 = vmatpush1.msra.mxu0 0.0
    %1202 = vmatprep.subr.mxu0 0.0
    %1203 = vmatpush1.msra.mxu0 0.0
    %1204 = vmatprep.subr.mxu0 0.0
    %1205 = vmatpush1.msra.mxu0 0.0
    %1206 = vmatprep.subr.mxu0 0.0
    %1207 = vmatpush1.msra.mxu0 0.0
    %1208 = vmatprep.subr.mxu0 0.0
    %1209 = vmatpush1.msra.mxu0 0.0
    %1210 = vmatprep.subr.mxu0 0.0
    %1211 = vmatpush1.msra.mxu0 0.0
    %1212 = vmatprep.subr.mxu0 0.0
    %1213 = vmatpush1.msra.mxu0 0.0
    %1214 = vmatprep.subr.mxu0 0.0
    %1215 = vmatpush1.msra.mxu0 0.0
    %1216 = vmatprep.subr.mxu0 0.0
    %1217 = vmatpush1.msra.mxu0 0.0
    %1218 = vmatprep.subr.mxu0 0.0
    %1219 = vmatpush1.msra.mxu0 0.0
    %1220 = vmatprep.subr.mxu0 0.0
    %1221 = vmatpush1.msra.mxu0 0.0
    %1222 = vmatprep.subr.mxu0 0.0
    %1223 = vmatpush1.msra.mxu0 0.0
    %1224 = vmatprep.subr.mxu0 0.0
    %1225 = vmatpush1.msra.mxu0 0.0
    %1226 = vmatprep.subr.mxu0 0.0
    %1227 = vmatpush1.msra.mxu0 0.0
    %1228 = vmatprep.subr.mxu0 0.0
    %1229 = vmatpush1.msra.mxu0 0.0
    %1230 = vmatprep.subr.mxu0 0.0
    %1231 = vmatpush1.msra.mxu0 0.0
    %1232 = vmatprep.subr.mxu0 0.0
    %1233 = vmatpush1.msra.mxu0 0.0
    %1234 = vmatprep.subr.mxu0 0.0
    %1235 = vmatpush1.msra.mxu0 0.0
    %1236 = vmatprep.subr.mxu0 0.0
    %1237 = vmatpush1.msra.mxu0 0.0
    %1238 = vmatprep.subr.mxu0 0.0
    %1239 = vmatpush1.msra.mxu0 0.0
    %1240 = vmatprep.subr.mxu0 0.0
    %1241 = vmatpush1.msra.mxu0 0.0
    %1242 = vmatprep.subr.mxu0 0.0
    %1243 = vmatpush1.msra.mxu0 0.0
    %1244 = vmatprep.subr.mxu0 0.0
    %1245 = vmatpush1.msra.mxu0 0.0
    %1246 = vmatprep.mubr.f32.mxu0 0.0
    %1247 = vmatmul.mubr.f32.gmra.mrb[0].mxu0 %v1180
    %v1248 = vpop.f32.mrb[0].mxu0
    %v1249 = vadd.f32 %v1177, %v1248
    %v1250 = vpop.f32.mrb[0].mxu0
    %1251 = vdwg.mxu0
    %v1252 = vmax.f32 %v1249, 0.0
    %v1253 = vld [vmem:[%s13] sm:$0xff]
    %v1254 = vld [vmem:[%s13 + $0x8] sm:$0xff]
    %v1255 = vld [vmem:[%s13 + $0x10] sm:$0xff]
    %v1256 = vld [vmem:[%s13 + $0x18] sm:$0xff]
    %v1257 = vld [vmem:[%s14] sm:$0x1]
    %v1259 = vlaneseq
    %v1260 = vshrl.u32 %v1259, 7
    %v1261 = vsub.s32 0, %v1260
    %v1262 = vrot.slane %v1257, %v1261
    %v1265 = vsel %vm414, %v1252, 0
    %1267 = vmatprep.subr.mxu0 0.0
    %1268 = vmatpush1.msra.mxu0 %v1253
    %1269 = vmatprep.subr.mxu0 0.0
    %1270 = vmatpush1.msra.mxu0 %v1254
    %1271 = vmatprep.subr.mxu0 0.0
    %1272 = vmatpush1.msra.mxu0 %v1255
    %1273 = vmatprep.subr.mxu0 0.0
    %1274 = vmatpush1.msra.mxu0 %v1256
    %1275 = vmatprep.subr.mxu0 0.0
    %1276 = vmatpush1.msra.mxu0 0.0
    %1277 = vmatprep.subr.mxu0 0.0
    %1278 = vmatpush1.msra.mxu0 0.0
    %1279 = vmatprep.subr.mxu0 0.0
    %1280 = vmatpush1.msra.mxu0 0.0
    %1281 = vmatprep.subr.mxu0 0.0
    %1282 = vmatpush1.msra.mxu0 0.0
    %1283 = vmatprep.subr.mxu0 0.0
    %1284 = vmatpush1.msra.mxu0 0.0
    %1285 = vmatprep.subr.mxu0 0.0
    %1286 = vmatpush1.msra.mxu0 0.0
    %1287 = vmatprep.subr.mxu0 0.0
    %1288 = vmatpush1.msra.mxu0 0.0
    %1289 = vmatprep.subr.mxu0 0.0
    %1290 = vmatpush1.msra.mxu0 0.0
    %1291 = vmatprep.subr.mxu0 0.0
    %1292 = vmatpush1.msra.mxu0 0.0
    %1293 = vmatprep.subr.mxu0 0.0
    %1294 = vmatpush1.msra.mxu0 0.0
    %1295 = vmatprep.subr.mxu0 0.0
    %1296 = vmatpush1.msra.mxu0 0.0
    %1297 = vmatprep.subr.mxu0 0.0
    %1298 = vmatpush1.msra.mxu0 0.0
    %1299 = vmatprep.subr.mxu0 0.0
    %1300 = vmatpush1.msra.mxu0 0.0
    %1301 = vmatprep.subr.mxu0 0.0
    %1302 = vmatpush1.msra.mxu0 0.0
    %1303 = vmatprep.subr.mxu0 0.0
    %1304 = vmatpush1.msra.mxu0 0.0
    %1305 = vmatprep.subr.mxu0 0.0
    %1306 = vmatpush1.msra.mxu0 0.0
    %1307 = vmatprep.subr.mxu0 0.0
    %1308 = vmatpush1.msra.mxu0 0.0
    %1309 = vmatprep.subr.mxu0 0.0
    %1310 = vmatpush1.msra.mxu0 0.0
    %1311 = vmatprep.subr.mxu0 0.0
    %1312 = vmatpush1.msra.mxu0 0.0
    %1313 = vmatprep.subr.mxu0 0.0
    %1314 = vmatpush1.msra.mxu0 0.0
    %1315 = vmatprep.subr.mxu0 0.0
    %1316 = vmatpush1.msra.mxu0 0.0
    %1317 = vmatprep.subr.mxu0 0.0
    %1318 = vmatpush1.msra.mxu0 0.0
    %1319 = vmatprep.subr.mxu0 0.0
    %1320 = vmatpush1.msra.mxu0 0.0
    %1321 = vmatprep.subr.mxu0 0.0
    %1322 = vmatpush1.msra.mxu0 0.0
    %1323 = vmatprep.subr.mxu0 0.0
    %1324 = vmatpush1.msra.mxu0 0.0
    %1325 = vmatprep.subr.mxu0 0.0
    %1326 = vmatpush1.msra.mxu0 0.0
    %1327 = vmatprep.subr.mxu0 0.0
    %1328 = vmatpush1.msra.mxu0 0.0
    %1329 = vmatprep.subr.mxu0 0.0
    %1330 = vmatpush1.msra.mxu0 0.0
    %1331 = vmatprep.mubr.f32.mxu0 0.0
    %1332 = vmatmul.mubr.f32.gmra.mrb[0].mxu0 %v1265
    %v1333 = vpop.f32.mrb[0].mxu0
    %v1334 = vadd.f32 %v1262, %v1333
    %v1335 = vpop.f32.mrb[0].mxu0
    %1336 = vdwg.mxu0
    %vm1337 = vcmask 25600
    %v1338 = vsel %vm1337, %v1334, -inf
    %1339 = vmax.xlane.f32.xlu0 %v1338
    %v1340 = vpop.xlane.xlu0 %1339
    %v1341 = vsub.f32 %v1334, %v1340
    %v1342 = vmul.f32 %v1341, 1.442695
    %v1343 = vpow.pop %v1342
    %v1344 = vsel %vm1337, %v1343, 0.0
    %1345 = vadd.xlane.f32.xlu0 %v1344
    %v1346 = vpop.xlane.xlu0 %1345
    %v1347 = vrcp.pop %v1346
    %v1348 = vmul.f32 %v1343, %v1347
    %v1351 = vunpack.c.l.s4 1966171168
    %v1352 = vunpack.c.0.s8 %v1351
    %v1353 = vlaneseq
    %v1354 = vshrl.u32 %v1353, 7
    %v1355 = vsub.s32 %v1352, %v1354
    %v1356 = vrot.slane %v1348, %v1355
    %v1357 = vcombine.high %v1356, %v1356
    %v1359 = vunpack.c.l.s4 1966171168
    %v1360 = vunpack.c.0.s8 %v1359
    %v1361 = vlaneseq
    %v1362 = vshrl.u32 %v1361, 7
    %v1363 = vsub.s32 %v1360, %v1362
    %v1364 = vrot.slane %v1356, %v1363
    %v1366 = vunpack.c.l.s4 1966171168
    %v1367 = vunpack.c.0.s8 %v1366
    %v1368 = vlaneseq
    %v1369 = vshrl.u32 %v1368, 7
    %v1370 = vsub.s32 %v1367, %v1369
    %v1371 = vrot.slane %v1357, %v1370
    %vm1374 = vcmask 24576
    %1375 = vst.msk [vmem:[#allocation2] sm:$0x1] %vm1374, %v1364
    %1376 = vst.msk [vmem:[#allocation2 + $0x1] sm:$0x1] %vm1374, %v1371
    // Predicated region
    $region62: #{baseline_model_forward.1} parent=1 // pred_check
      _
    $region63: #{baseline_model_forward.1} parent=1 // pred_check_branch
      %1378 = sbr.rel (0) target = $region65
    $region64: #{baseline_model_forward.1} parent=1 // pred_region
      %s1380 = ssub.s32 32, 32
      %1381 = vsyncadd [#allocation3], %s1380
      %s1382 = sshll.u32 [#allocation2], 4
      %s1383 = int_to_ptr.vmem [resolvable:$true] %s1382
      %1388 = dma.vmem_to_hbm [thread:$0]  %s1383, 32, %s15, [#allocation3], 16, 16, 1
    $region65: #{baseline_model_forward.1} parent=1 // pred_fallthru
      _
    // Predicated region
    $region66: #{baseline_model_forward.1} parent=1 // pred_check
      _
    $region67: #{baseline_model_forward.1} parent=1 // pred_check_branch
      %1390 = sbr.rel (0) target = $region69
    $region68: #{baseline_model_forward.1} parent=1 // pred_region
      %1391 = dma.done [#allocation3], 32
    $region69: #{baseline_model_forward.1} parent=1 // pred_fallthru
      _
    %1392 = vsyncpa [#allocation3], 1

</llo_original>
